<compile_context>
chip_gen: v6e
topology: v6e:2x2x1
jax: 0.10.0
libtpu: 0.0.40
codegen_flags: <defaults>
</compile_context>

<pallas_src>
import functools

import jax
import jax.numpy as jnp
from jax.experimental import pallas as pl
from jax.experimental.pallas import tpu as pltpu


def autopad(k, p=None, d=1):
    if d > 1:
        k = d * (k - 1) + 1 if isinstance(k, int) else [d * (x - 1) + 1 for x in k]
    if p is None:
        p = k // 2 if isinstance(k, int) else [x // 2 for x in k]
    return p


def _round_up(x, m):
    return ((x + m - 1) // m) * m


def _pick_tn(c2p):
    # v5e MXU is 4x128^2 and v6e/v7x are 2x256^2: tn=256 (or 128) keeps the per-tap
    # weight push short and leaves VMEM for a bigger row tile (review: prefer 256/128).
    for tn in (256, 128):
        if c2p % tn == 0:
            return tn
    return 128  # unreachable: c2p is a multiple of 128


def _vmem_budget_bytes():
    # Generation-aware VMEM budget (~75% of physical VMEM); conservative fallback
    # (48 MiB fits v7x's 64 MiB) if the query is unavailable.
    try:
        return int(0.75 * pltpu.get_tpu_info().vmem_capacity_bytes)
    except Exception:
        return 48 * 1024 * 1024


# ------------------------------ Pallas kernel ------------------------------ #
def _conv_bn_silu_kernel(x_ref, w_ref, b_ref, o_ref, *, kk, th, wo, kc1):
    """One (batch, C2-tile, row-slab) block of fused conv + folded-BN + SiLU.

    x_ref: (th + kk - 1, wo, kk*C1)  halo'd row slab, dj taps stacked on channels (bf16)
    w_ref: (kk, kk*C1, TN)           conv weight with BN scale folded in (bf16)
    b_ref: (1, TN)                   folded BN bias (f32)
    o_ref: (th, wo, TN)              output tile (bf16)
    """
    tn = o_ref.shape[-1]
    acc = jnp.zeros((th * wo, tn), jnp.float32)
    # kk GEMMs with K = kk*C1.  The vertical (di) shift is a static slice along the
    # outermost (non-tiled) dim of the slab -> pure addressing, no re-layout copies.
    for di in range(kk):
        slab = x_ref[di:di + th, :, :]                         # (th, wo, kk*C1)
        acc = acc + jnp.dot(slab.reshape(th * wo, kc1), w_ref[di],
                            preferred_element_type=jnp.float32)
    y = acc + b_ref[...]                                       # BN bias (scale already in weight)
    y = y * pl.reciprocal(1.0 + jnp.exp(-y), approx=True)      # SiLU; reciprocal on EUP
    o_ref[...] = y.reshape(th, wo, tn).astype(o_ref.dtype)


# ------------------------------ NHWC core ----------------------------------- #
def conv_bn_silu_nhwc(x_nhwc, weight, bn_gamma, bn_beta, bn_mean, bn_var,
                      k=3, s=1, p=None, d=1, eps=1e-5):
    """Fused Conv2d(bias=False) + BatchNorm2d(eval) + SiLU.  NHWC in -> NHWC out (bf16)."""
    # TODO(synk): stride != 1, dilation != 1, groups != 1, even kernel sizes and
    #             non-SiLU activations are not handled by this specialized kernel.
    assert s == 1 and d == 1, "kernel specialized to stride=1, dilation=1, groups=1"
    assert k % 2 == 1, "'same'-size output assumes odd kernel size"
    pad = autopad(k, p, d)
    N, H, W, C1 = x_nhwc.shape
    C2 = weight.shape[0]
    Ho, Wo = H, W
    kc1 = k * C1

    # ---- fold BatchNorm (inference) into weight + bias; stack dj taps on channels ----
    scale = bn_gamma / jnp.sqrt(bn_var + eps)                      # (C2,)
    bias = bn_beta - bn_mean * scale                               # (C2,)
    w_fold = weight * scale[:, None, None, None]                   # (C2, C1, k, k)
    w_st = jnp.transpose(w_fold, (2, 3, 1, 0)).reshape(k, kc1, C2)  # [di, dj*C1+c, o]

    C2p = _round_up(C2, 128)
    tn = _pick_tn(C2p)
    n_j = C2p // tn
    w_st = jnp.pad(w_st, ((0, 0), (0, 0), (0, C2p - C2))).astype(jnp.bfloat16)
    bias_p = jnp.pad(bias, (0, C2p - C2)).reshape(1, C2p).astype(jnp.float32)

    # ---- spatial tiling: target ~2048 matmul rows per grid step, kept within VMEM ----
    wo_p = _round_up(Wo, 8)
    budget = _vmem_budget_bytes()
    th = max(1, min(Ho, pl.cdiv(2048, wo_p)))

    def _vmem_est(t):
        lanes = max(128, kc1)                                      # lane padding of kk*C1
        x_buf = 2 * (t + k - 1) * wo_p * lanes * 2                 # image slab, double buffered
        o_buf = 2 * t * wo_p * tn * 2                              # bf16 output, double buffered
        acc = t * wo_p * tn * 4                                    # f32 accumulator temp
        w_buf = 2 * k * _round_up(kc1, 8) * tn * 2
        return x_buf + o_buf + acc + w_buf + (2 << 20)

    while th > 1 and _vmem_est(th) > budget // 2:
        th = (th + 1) // 2
    ho_p = pl.cdiv(Ho, th) * th
    n_h = ho_p // th

    # ---- one layout pass over the (small-C1) input:
    #      bf16 cast + zero pad + dj channel-stack + halo'd row-slab gather ----
    x = x_nhwc.astype(jnp.bfloat16)
    x = jnp.pad(x, ((0, 0),
                    (pad, pad + (ho_p - Ho)),
                    (pad, pad + (wo_p - Wo)),
                    (0, 0)))                                       # (N, ho_p+2p, wo_p+2p, C1)
    x = jnp.concatenate([x[:, :, dj:dj + wo_p, :] for dj in range(k)], axis=-1)
    row_idx = jnp.arange(n_h)[:, None] * th + jnp.arange(th + k - 1)[None, :]
    x_blk = x[:, row_idx]                                          # (N, n_h, th+k-1, wo_p, k*C1)

    flops = 2 * N * Ho * Wo * C2 * C1 * k * k
    bytes_accessed = int(x_blk.size * 2 * n_j + w_st.size * 2 * N
                         + bias_p.size * 4 + N * ho_p * wo_p * C2p * 2)

    kernel = functools.partial(_conv_bn_silu_kernel, kk=k, th=th, wo=wo_p, kc1=kc1)
    out = pl.pallas_call(
        kernel,
        out_shape=jax.ShapeDtypeStruct((N, ho_p, wo_p, C2p), jnp.bfloat16),
        grid_spec=pltpu.PrefetchScalarGridSpec(
            num_scalar_prefetch=0,
            grid=(N, n_j, n_h),
            in_specs=[
                # streamed halo'd row slab: O(th * Wo) VMEM, changes only with (n, h)
                pl.BlockSpec((None, None, th + k - 1, wo_p, kc1),
                             lambda n, j, h: (n, h, 0, 0, 0)),
                # weight tile: constant across h -> fetched once per (n, j)
                pl.BlockSpec((k, kc1, tn), lambda n, j, h: (0, 0, j)),
                pl.BlockSpec((1, tn), lambda n, j, h: (0, j)),
            ],
            out_specs=pl.BlockSpec((None, th, wo_p, tn), lambda n, j, h: (n, h, 0, j)),
        ),
        compiler_params=pltpu.CompilerParams(
            dimension_semantics=("parallel", "parallel", "parallel"),
            vmem_limit_bytes=budget,
        ),
        cost_estimate=pl.CostEstimate(flops=flops,
                                      transcendentals=N * Ho * Wo * C2,
                                      bytes_accessed=bytes_accessed),
    )(x_blk, w_st, bias_p)

    return out[:, :Ho, :Wo, :C2]                                   # strip tile / lane padding


# ------------------------------ NCHW adapter --------------------------------- #
def conv_forward(x_nchw, weight, bn_gamma, bn_beta, bn_mean, bn_var,
                 k=3, s=1, p=None, d=1, eps=1e-5):
    """NCHW drop-in for the PyTorch module.  (In a real encoder keep NHWC end-to-end
    and call conv_bn_silu_nhwc directly to avoid the layout transposes.)"""
    x_nhwc = jnp.transpose(x_nchw, (0, 2, 3, 1))
    y = conv_bn_silu_nhwc(x_nhwc, weight, bn_gamma, bn_beta, bn_mean, bn_var,
                          k=k, s=s, p=p, d=d, eps=eps)
    return jnp.transpose(y, (0, 3, 1, 2))


# ---------------------------------- main ------------------------------------ #
if __name__ == "__main__":
    key = jax.random.PRNGKey(0)
    kx, kw, kg, kb, km, kv = jax.random.split(key, 6)

    N, C1, H, W = 2, 4, 16, 16
    C2, k = 8, 3
    eps = 1e-5
    pad = k // 2

    x = jax.random.normal(kx, (N, C1, H, W), dtype=jnp.float32)
    weight = jax.random.normal(kw, (C2, C1, k, k), dtype=jnp.float32) * 0.1
    bn_gamma = jax.random.uniform(kg, (C2,), minval=0.5, maxval=1.5)
    bn_beta = jax.random.normal(kb, (C2,)) * 0.1
    bn_mean = jax.random.normal(km, (C2,)) * 0.1
    bn_var = jax.random.uniform(kv, (C2,), minval=0.5, maxval=1.5)

    out = conv_forward(x, weight, bn_gamma, bn_beta, bn_mean, bn_var, k=k, eps=eps)
    out = jax.block_until_ready(out)
    out_f32 = out.astype(jnp.float32)

    # pure-JAX reference using the SAME bf16-quantized operands the kernel consumes
    # (BN scale folded into the weight); output rounded to bf16 like the kernel store.
    scale = bn_gamma / jnp.sqrt(bn_var + eps)
    bias = bn_beta - bn_mean * scale
    w_fold = (weight * scale[:, None, None, None]).astype(jnp.bfloat16).astype(jnp.float32)
    x_q = x.astype(jnp.bfloat16).astype(jnp.float32)
    ref = jax.lax.conv_general_dilated(
        x_q, w_fold, window_strides=(1, 1), padding=((pad, pad), (pad, pad)),
        dimension_numbers=("NCHW", "OIHW", "NCHW"))
    ref = ref + bias[None, :, None, None]
    ref = ref * jax.nn.sigmoid(ref)
    ref = ref.astype(jnp.bfloat16).astype(jnp.float32)

    assert out.shape == (N, C2, H, W)
    max_err = float(jnp.max(jnp.abs(out_f32 - ref)))
    assert jnp.allclose(out_f32, ref, atol=2e-2, rtol=2e-2), max_err

    print("KERNEL_OK")
</pallas_src>

<mosaic_0001>
module attributes {stable_mosaic.version = 11 : i64} {
  func.func @_conv_bn_silu_kernel(%arg0: i32, %arg1: i32, %arg2: i32, %arg3: memref<1x1x18x16x12xbf16, #tpu.memory_space<vmem>>, %arg4: memref<3x12x128xbf16, #tpu.memory_space<vmem>>, %arg5: memref<1x128xf32, #tpu.memory_space<vmem>>, %arg6: memref<1x16x16x128xbf16, #tpu.memory_space<vmem>>) attributes {dimension_semantics = [#tpu.dimension_semantics<parallel>, #tpu.dimension_semantics<parallel>, #tpu.dimension_semantics<parallel>], iteration_bounds = array<i64: 2, 1, 1>, scalar_prefetch = 0 : i64, scratch_operands = 0 : i64, tpu.core_type = #tpu.core_type<tc>, window_params = [{transform_indices = @transform_0, window_bounds = array<i64: 1, 1, 18, 16, 12>}, {transform_indices = @transform_1, window_bounds = array<i64: 3, 12, 128>}, {transform_indices = @transform_2, window_bounds = array<i64: 1, 128>}, {transform_indices = @transform_3, window_bounds = array<i64: 1, 16, 16, 128>}]} {
    %cst = arith.constant 0.000000e+00 : f32
    %0 = vector.broadcast %cst : f32 to vector<256x128xf32>
    %c0 = arith.constant 0 : index
    %c0_0 = arith.constant 0 : index
    %c0_1 = arith.constant 0 : index
    %c0_2 = arith.constant 0 : index
    %c0_3 = arith.constant 0 : index
    %1 = vector.load %arg3[%c0, %c0_0, %c0_1, %c0_2, %c0_3] : memref<1x1x18x16x12xbf16, #tpu.memory_space<vmem>>, vector<1x1x16x16x12xbf16>
    %2 = vector.shape_cast %1 : vector<1x1x16x16x12xbf16> to vector<16x16x12xbf16>
    %3 = vector.shape_cast %2 : vector<16x16x12xbf16> to vector<256x12xbf16>
    %c0_4 = arith.constant 0 : index
    %c0_5 = arith.constant 0 : index
    %c0_6 = arith.constant 0 : index
    %4 = vector.load %arg4[%c0_4, %c0_5, %c0_6] : memref<3x12x128xbf16, #tpu.memory_space<vmem>>, vector<1x12x128xbf16>
    %5 = vector.shape_cast %4 : vector<1x12x128xbf16> to vector<12x128xbf16>
    %cst_7 = arith.constant dense<0.000000e+00> : vector<256x128xf32>
    %6 = tpu.matmul %3, %5, %cst_7 {dimension_numbers = #tpu.dot_dimension_numbers<[1], [0], [0], [1], [0, 0, 1, 1], [], []>} : vector<256x12xbf16>, vector<12x128xbf16>, vector<256x128xf32> -> vector<256x128xf32>
    %7 = arith.addf %0, %6 : vector<256x128xf32>
    %c0_8 = arith.constant 0 : index
    %c0_9 = arith.constant 0 : index
    %c1 = arith.constant 1 : index
    %c0_10 = arith.constant 0 : index
    %c0_11 = arith.constant 0 : index
    %8 = vector.load %arg3[%c0_8, %c0_9, %c1, %c0_10, %c0_11] : memref<1x1x18x16x12xbf16, #tpu.memory_space<vmem>>, vector<1x1x16x16x12xbf16>
    %9 = vector.shape_cast %8 : vector<1x1x16x16x12xbf16> to vector<16x16x12xbf16>
    %10 = vector.shape_cast %9 : vector<16x16x12xbf16> to vector<256x12xbf16>
    %c1_12 = arith.constant 1 : index
    %c0_13 = arith.constant 0 : index
    %c0_14 = arith.constant 0 : index
    %11 = vector.load %arg4[%c1_12, %c0_13, %c0_14] : memref<3x12x128xbf16, #tpu.memory_space<vmem>>, vector<1x12x128xbf16>
    %12 = vector.shape_cast %11 : vector<1x12x128xbf16> to vector<12x128xbf16>
    %cst_15 = arith.constant dense<0.000000e+00> : vector<256x128xf32>
    %13 = tpu.matmul %10, %12, %cst_15 {dimension_numbers = #tpu.dot_dimension_numbers<[1], [0], [0], [1], [0, 0, 1, 1], [], []>} : vector<256x12xbf16>, vector<12x128xbf16>, vector<256x128xf32> -> vector<256x128xf32>
    %14 = arith.addf %7, %13 : vector<256x128xf32>
    %c0_16 = arith.constant 0 : index
    %c0_17 = arith.constant 0 : index
    %c2 = arith.constant 2 : index
    %c0_18 = arith.constant 0 : index
    %c0_19 = arith.constant 0 : index
    %15 = vector.load %arg3[%c0_16, %c0_17, %c2, %c0_18, %c0_19] : memref<1x1x18x16x12xbf16, #tpu.memory_space<vmem>>, vector<1x1x16x16x12xbf16>
    %16 = vector.shape_cast %15 : vector<1x1x16x16x12xbf16> to vector<16x16x12xbf16>
    %17 = vector.shape_cast %16 : vector<16x16x12xbf16> to vector<256x12xbf16>
    %c2_20 = arith.constant 2 : index
    %c0_21 = arith.constant 0 : index
    %c0_22 = arith.constant 0 : index
    %18 = vector.load %arg4[%c2_20, %c0_21, %c0_22] : memref<3x12x128xbf16, #tpu.memory_space<vmem>>, vector<1x12x128xbf16>
    %19 = vector.shape_cast %18 : vector<1x12x128xbf16> to vector<12x128xbf16>
    %cst_23 = arith.constant dense<0.000000e+00> : vector<256x128xf32>
    %20 = tpu.matmul %17, %19, %cst_23 {dimension_numbers = #tpu.dot_dimension_numbers<[1], [0], [0], [1], [0, 0, 1, 1], [], []>} : vector<256x12xbf16>, vector<12x128xbf16>, vector<256x128xf32> -> vector<256x128xf32>
    %21 = arith.addf %14, %20 : vector<256x128xf32>
    %c0_24 = arith.constant 0 : index
    %c0_25 = arith.constant 0 : index
    %22 = vector.load %arg5[%c0_24, %c0_25] : memref<1x128xf32, #tpu.memory_space<vmem>>, vector<1x128xf32>
    %23 = vector.broadcast %22 : vector<1x128xf32> to vector<256x128xf32>
    %24 = arith.addf %21, %23 : vector<256x128xf32>
    %cst_26 = arith.constant 0.000000e+00 : f32
    %25 = vector.broadcast %cst_26 : f32 to vector<256x128xf32>
    %26 = arith.subf %25, %24 : vector<256x128xf32>
    %27 = math.exp %26 : vector<256x128xf32>
    %cst_27 = arith.constant 1.000000e+00 : f32
    %28 = vector.broadcast %cst_27 : f32 to vector<256x128xf32>
    %29 = arith.addf %28, %27 : vector<256x128xf32>
    %30 = tpu.reciprocal %29 {approx = true} : vector<256x128xf32> -> vector<256x128xf32>
    %31 = arith.mulf %24, %30 : vector<256x128xf32>
    %32 = vector.shape_cast %31 : vector<256x128xf32> to vector<16x16x128xf32>
    %33 = arith.truncf %32 : vector<16x16x128xf32> to vector<16x16x128xbf16>
    %c0_28 = arith.constant 0 : index
    %c0_29 = arith.constant 0 : index
    %c0_30 = arith.constant 0 : index
    %c0_31 = arith.constant 0 : index
    %34 = vector.load %arg6[%c0_28, %c0_29, %c0_30, %c0_31] : memref<1x16x16x128xbf16, #tpu.memory_space<vmem>>, vector<1x16x16x128xbf16>
    %35 = vector.shape_cast %34 : vector<1x16x16x128xbf16> to vector<16x16x128xbf16>
    %36 = vector.shape_cast %33 : vector<16x16x128xbf16> to vector<1x16x16x128xbf16>
    tpu.vector_store %arg6[%c0_28, %c0_29, %c0_30, %c0_31], %36 {strides = array<i32>} : memref<1x16x16x128xbf16, #tpu.memory_space<vmem>>, vector<1x16x16x128xbf16>,
    return
  }
  func.func @transform_0(%arg0: i32, %arg1: i32, %arg2: i32) -> (i32, i32, i32, i32, i32) {
    %c0_i32 = arith.constant 0 : i32
    %c0_i32_0 = arith.constant 0 : i32
    %c0_i32_1 = arith.constant 0 : i32
    %c0_i32_2 = arith.constant 0 : i32
    return %arg0, %arg2, %c0_i32, %c0_i32_0, %c0_i32_1 : i32, i32, i32, i32, i32
  }
  func.func @transform_1(%arg0: i32, %arg1: i32, %arg2: i32) -> (i32, i32, i32) {
    %c0_i32 = arith.constant 0 : i32
    %c0_i32_0 = arith.constant 0 : i32
    %c0_i32_1 = arith.constant 0 : i32
    return %c0_i32, %c0_i32_0, %arg1 : i32, i32, i32
  }
  func.func @transform_2(%arg0: i32, %arg1: i32, %arg2: i32) -> (i32, i32) {
    %c0_i32 = arith.constant 0 : i32
    %c0_i32_0 = arith.constant 0 : i32
    return %c0_i32, %arg1 : i32, i32
  }
  func.func @transform_3(%arg0: i32, %arg1: i32, %arg2: i32) -> (i32, i32, i32, i32) {
    %c0_i32 = arith.constant 0 : i32
    %c0_i32_0 = arith.constant 0 : i32
    return %arg0, %arg2, %c0_i32, %arg1 : i32, i32, i32, i32
  }
}

</mosaic_0001>

<llo_original>
// kernel: tpu_custom_call.1
$region0: #{tpu_custom_call.1}
  #allocation0 [shape = 'u32[]', space=smem, size = 0x4, offset = 0x4, fixed_abs, tag = 'smem constant byte address 0x4 - core index']
  #allocation1 [shape = 'u32[144,128]{1,0:T(1,128)}', space=vmem, size = 0x12000, scoped, tag = 'internal scratch']
  %s0 = inlined_call_operand.vmem [shape: bf16[2,1,18,16,12], index: 0, kind: input, shape index: {}]
  %s1 = inlined_call_operand.vmem [shape: bf16[3,12,128], index: 1, kind: input, shape index: {}]
  %s2 = inlined_call_operand.vmem [shape: f32[1,128], index: 2, kind: input, shape index: {}]
  %s3 = inlined_call_operand.hbm [shape: bf16[2,16,16,128], index: 3, kind: output, shape index: {}]
  %s4 = sld [smem:[#allocation0]]
  $region45: #{tpu_custom_call.1} parent=0
    _
  %s6 = ssub.s32 1, %s4
  %s7 = scalar_select 0, %s6, %s4
  $region1: #{tpu_custom_call.1} parent=0
    #allocation2 [shape = 'u8[131072]{0}', space=vmem, size = 0x20000, scoped, tag = 'output window, operand 0']
    #allocation3 [shape = 's32[2]{0}', space=sflag, size = 0x8, scoped, tag = 'scoped memory for tpu_custom_call.1']
    %8 = vsyncpa [#allocation3], 0
    %s9 = scalar_lea.sflag [#allocation3], 1
    %10 = vsyncpa %s9, 0
    loop: start=0, step=1, limit=4
    $region2: #{tpu_custom_call.1} parent=1 // loop_pre_header
      _
    $region3: #{tpu_custom_call.1} parent=1 // loop_header
      %s12 = sphi 0, %s16
      %p13 = scmp.ge.s32.totalorder %s12, 4
      %s19 = sphi 0, %s38
      %s20 = sphi 0, %s34
      %s21 = sphi 0, %s30
      %s22 = sphi 0, %s19
      %s23 = sphi 0, %s20
      %s24 = sphi 0, %s21
      %s25 = sphi 0, %s22
      %s26 = sphi 0, %s23
      %s27 = sphi 0, %s24
      %s43 = sphi 0, %s45
      %s46 = sphi 0, %s43
      %s47 = sphi 0, %s46
      %s63 = sphi 0, %s47
      %s69 = sphi 0, %s71
      %s72 = sphi 0, %s69
      %s73 = sphi 0, %s72
      %s89 = sphi 0, %s73
      %s95 = sphi 0, %s97
      %s98 = sphi 0, %s95
      %s99 = sphi 0, %s98
      %s115 = sphi 0, %s99
      %s125 = sphi 0, %s127
      %s128 = sphi 0, %s125
      %s129 = sphi 0, %s128
      %s145 = sphi 0, %s129
    $region4: #{tpu_custom_call.1} parent=1 // loop_header_branch
      %15 = sbr.rel (%p13) target = $region8
    $region5: #{tpu_custom_call.1} parent=1 // loop_body
      %s17 = ssub.s32 %s12, 1
      %s18 = ssub.s32 %s12, 2
      %s28 = sadd.s32 1, %s21
      %p29 = scmp.ge.s32.totalorder %s28, 1
      %s30 = scalar_select %p29, 0, %s28
      %s31 = sadd.s32 1, %s20
      %s32 = scalar_select %p29, %s31, %s20
      %p33 = scmp.ge.s32.totalorder %s32, 1
      %s34 = scalar_select %p33, 0, %s32
      %s35 = sadd.s32 1, %s19
      %s36 = scalar_select %p33, %s35, %s19
      %p37 = scmp.ge.s32.totalorder %s36, 2
      %s38 = scalar_select %p37, 0, %s36
      %s39 = ssub.s32 %s19, %s38
      %s40 = ssub.s32 %s21, %s30
      %s41 = sor.u32 %s39, %s40
      %p42 = scmp.eq.s32.totalorder %s41, 0
      %s44 = sadd.s32 %s43, 1
      %s45 = scalar_select %p42, %s43, %s44
      %p48 = pneg %p42
      %p49 = scmp.eq.s32.totalorder %s12, 1
      %p50 = por %p48, %p49
      %p51 = scmp.ne.s32.totalorder %s43, %s46
      %p52 = scmp.eq.s32.totalorder %s12, 0
      %p53 = por %p51, %p52
      %p54 = scmp.ne.s32.totalorder %s43, %s46
      %p55 = scmp.eq.s32.totalorder %s17, 1
      %p56 = por %p54, %p55
      %p57 = scmp.ne.s32.totalorder %s46, %s47
      %p58 = scmp.eq.s32.totalorder %s17, 0
      %p59 = por %p57, %p58
      %p60 = scmp.ne.s32.totalorder %s46, %s47
      %p61 = scmp.eq.s32.totalorder %s18, 1
      %p62 = por %p60, %p61
      %p64 = scmp.ne.s32.totalorder %s47, %s63
      %p65 = scmp.eq.s32.totalorder %s18, 0
      %p66 = por %p64, %p65
      %s67 = ssub.s32 %s20, %s34
      %p68 = scmp.eq.s32.totalorder %s67, 0
      %s70 = sadd.s32 %s69, 1
      %s71 = scalar_select %p68, %s69, %s70
      %p74 = pneg %p68
      %p75 = scmp.eq.s32.totalorder %s12, 1
      %p76 = por %p74, %p75
      %p77 = scmp.ne.s32.totalorder %s69, %s72
      %p78 = scmp.eq.s32.totalorder %s12, 0
      %p79 = por %p77, %p78
      %p80 = scmp.ne.s32.totalorder %s69, %s72
      %p81 = scmp.eq.s32.totalorder %s17, 1
      %p82 = por %p80, %p81
      %p83 = scmp.ne.s32.totalorder %s72, %s73
      %p84 = scmp.eq.s32.totalorder %s17, 0
      %p85 = por %p83, %p84
      %p86 = scmp.ne.s32.totalorder %s72, %s73
      %p87 = scmp.eq.s32.totalorder %s18, 1
      %p88 = por %p86, %p87
      %p90 = scmp.ne.s32.totalorder %s73, %s89
      %p91 = scmp.eq.s32.totalorder %s18, 0
      %p92 = por %p90, %p91
      %s93 = ssub.s32 %s20, %s34
      %p94 = scmp.eq.s32.totalorder %s93, 0
      %s96 = sadd.s32 %s95, 1
      %s97 = scalar_select %p94, %s95, %s96
      %p100 = pneg %p94
      %p101 = scmp.eq.s32.totalorder %s12, 1
      %p102 = por %p100, %p101
      %p103 = scmp.ne.s32.totalorder %s95, %s98
      %p104 = scmp.eq.s32.totalorder %s12, 0
      %p105 = por %p103, %p104
      %p106 = scmp.ne.s32.totalorder %s95, %s98
      %p107 = scmp.eq.s32.totalorder %s17, 1
      %p108 = por %p106, %p107
      %p109 = scmp.ne.s32.totalorder %s98, %s99
      %p110 = scmp.eq.s32.totalorder %s17, 0
      %p111 = por %p109, %p110
      %p112 = scmp.ne.s32.totalorder %s98, %s99
      %p113 = scmp.eq.s32.totalorder %s18, 1
      %p114 = por %p112, %p113
      %p116 = scmp.ne.s32.totalorder %s99, %s115
      %p117 = scmp.eq.s32.totalorder %s18, 0
      %p118 = por %p116, %p117
      %s119 = ssub.s32 %s19, %s38
      %s120 = ssub.s32 %s21, %s30
      %s121 = sor.u32 %s119, %s120
      %s122 = ssub.s32 %s20, %s34
      %s123 = sor.u32 %s121, %s122
      %p124 = scmp.eq.s32.totalorder %s123, 0
      %s126 = sadd.s32 %s125, 1
      %s127 = scalar_select %p124, %s125, %s126
      %p130 = pneg %p124
      %p131 = scmp.eq.s32.totalorder %s12, 1
      %p132 = por %p130, %p131
      %p133 = scmp.ne.s32.totalorder %s125, %s128
      %p134 = scmp.eq.s32.totalorder %s12, 0
      %p135 = por %p133, %p134
      %p136 = scmp.ne.s32.totalorder %s125, %s128
      %p137 = scmp.eq.s32.totalorder %s17, 1
      %p138 = por %p136, %p137
      %p139 = scmp.ne.s32.totalorder %s128, %s129
      %p140 = scmp.eq.s32.totalorder %s17, 0
      %p141 = por %p139, %p140
      %p142 = scmp.ne.s32.totalorder %s128, %s129
      %p143 = scmp.eq.s32.totalorder %s18, 1
      %p144 = por %p142, %p143
      %p146 = scmp.ne.s32.totalorder %s129, %s145
      %p147 = scmp.eq.s32.totalorder %s18, 0
      %p148 = por %p146, %p147
      %p149 = scmp.le.s32.totalorder 1, %s12
      %p150 = scmp.lt.s32.totalorder %s12, 3
      %p151 = pnand %p149, %p150
      %p152 = pneg %p151
      // Predicated region
      $region9: #{tpu_custom_call.1} parent=5 // pred_check
        _
      $region10: #{tpu_custom_call.1} parent=5 // pred_check_branch
        %154 = sbr.rel (%p151) target = $region12
      $region11: #{tpu_custom_call.1} parent=5 // pred_region
        %s155 = ssub.s32 %s12, 1
        // Predicated region
        $region13: #{tpu_custom_call.1} parent=11 // pred_check
          %p156 = pneg %p85
        $region14: #{tpu_custom_call.1} parent=11 // pred_check_branch
          %158 = sbr.rel (%p156) target = $region16
        $region15: #{tpu_custom_call.1} parent=11 // pred_region
          %p159 = scmp.lt.s32.totalorder %s23, 0
          %s160 = scalar_select %p159, %s23, 0
          %s161 = smul.addr %s160, 4
          %s162 = scalar_lea.vmem %s1, %s161
        $region16: #{tpu_custom_call.1} parent=11 // pred_fallthru
          _
        // Predicated region
        $region17: #{tpu_custom_call.1} parent=11 // pred_check
          %p163 = pneg %p111
        $region18: #{tpu_custom_call.1} parent=11 // pred_check_branch
          %165 = sbr.rel (%p163) target = $region20
        $region19: #{tpu_custom_call.1} parent=11 // pred_region
          %p166 = scmp.lt.s32.totalorder %s23, 0
          %s167 = scalar_select %p166, %s23, 0
          %s168 = scalar_lea.vmem %s2, %s167
        $region20: #{tpu_custom_call.1} parent=11 // pred_fallthru
          _
      $region12: #{tpu_custom_call.1} parent=5 // pred_fallthru
        _
      %p169 = scmp.lt.s32.totalorder %s12, 2
      // Predicated region
      $region21: #{tpu_custom_call.1} parent=5 // pred_check
        %p170 = pneg %p169
      $region22: #{tpu_custom_call.1} parent=5 // pred_check_branch
        %172 = sbr.rel (%p170) target = $region24
      $region23: #{tpu_custom_call.1} parent=5 // pred_region
        // Predicated region
        $region25: #{tpu_custom_call.1} parent=23 // pred_check
          %p173 = pneg %p53
        $region26: #{tpu_custom_call.1} parent=23 // pred_check_branch
          %175 = sbr.rel (%p173) target = $region28
        $region27: #{tpu_custom_call.1} parent=23 // pred_region
          %p176 = scmp.lt.s32.totalorder %s19, 1
          %s177 = scalar_select %p176, %s19, 1
          %p178 = scmp.lt.s32.totalorder %s21, 0
          %s179 = scalar_select %p178, %s21, 0
          %s180 = smul.addr %s179, 36
          %s181 = smul.addr %s177, 36
          %s182 = sadd.s32 %s180, %s181
          %s183 = smul.addr %s182, 4
          %s184 = scalar_lea.vmem %s0, %s183
        $region28: #{tpu_custom_call.1} parent=23 // pred_fallthru
          _
      $region24: #{tpu_custom_call.1} parent=5 // pred_fallthru
        _
      %p185 = scmp.le.s32.totalorder 1, %s12
      %p186 = scmp.lt.s32.totalorder %s12, 3
      %p187 = pnand %p185, %p186
      %p188 = pneg %p187
      // Predicated region
      $region29: #{tpu_custom_call.1} parent=5 // pred_check
        _
      $region30: #{tpu_custom_call.1} parent=5 // pred_check_branch
        %190 = sbr.rel (%p187) target = $region32
      $region31: #{tpu_custom_call.1} parent=5 // pred_region
        %s191 = ssub.s32 %s12, 1
        %p192 = scmp.lt.s32.totalorder %s22, 1
        %s193 = scalar_select %p192, %s22, 1
        %p194 = scmp.lt.s32.totalorder %s24, 0
        %s195 = scalar_select %p194, %s24, 0
        %s196 = smul.addr %s195, 36
        %s197 = smul.addr %s193, 36
        %s198 = sadd.s32 %s196, %s197
        %s199 = smul.addr %s198, 4
        %s200 = scalar_lea.vmem %s0, %s199
        %p201 = pneg %p59
        %p202 = pneg %p56
        %p203 = scmp.lt.s32.totalorder %s23, 0
        %s204 = scalar_select %p203, %s23, 0
        %s205 = smul.addr %s204, 4
        %s206 = scalar_lea.vmem %s1, %s205
        %p207 = pneg %p85
        %p208 = pneg %p82
        %p209 = scmp.lt.s32.totalorder %s23, 0
        %s210 = scalar_select %p209, %s23, 0
        %s211 = scalar_lea.vmem %s2, %s210
        %p212 = pneg %p111
        %p213 = pneg %p108
        %p214 = pneg %p141
        %p215 = pneg %p138
        %s216 = sand.u32 %s128, 1
        %s217 = scalar_lea.sflag [#allocation3], %s216
        %s218 = sand.u32 %s128, 1
        %s219 = smul.addr %s218, 128
        %s220 = scalar_lea.vmem [#allocation2], %s219
        %p221 = scmp.lt.s32.totalorder %s22, 1
        %s222 = scalar_select %p221, %s22, 1
        %p223 = scmp.lt.s32.totalorder %s24, 0
        %s224 = scalar_select %p223, %s24, 0
        %s225 = smul.addr %s224, 36
        %s226 = smul.addr %s222, 36
        %s227 = sadd.s32 %s225, %s226
        %s228 = smul.addr %s227, 4
        %s229 = scalar_lea.vmem %s0, %s228
        %p230 = scmp.lt.s32.totalorder %s23, 0
        %s231 = scalar_select %p230, %s23, 0
        %s232 = smul.addr %s231, 4
        %s233 = scalar_lea.vmem %s1, %s232
        %p234 = scmp.lt.s32.totalorder %s23, 0
        %s235 = scalar_select %p234, %s23, 0
        %s236 = scalar_lea.vmem %s2, %s235
        %s237 = smul.u32 16, %s24
        %v239 = vld [vmem:[%s229] sm:$0xf]
        %v240 = vld [vmem:[%s229 + $0x4] sm:$0xf]
        %v241 = vld [vmem:[%s229 + $0x8] sm:$0xf]
        %v242 = vld [vmem:[%s229 + $0xc] sm:$0xf]
        %v243 = vld [vmem:[%s229 + $0x10] sm:$0xf]
        %v244 = vld [vmem:[%s229 + $0x14] sm:$0xf]
        %v245 = vld [vmem:[%s229 + $0x18] sm:$0xf]
        %v246 = vld [vmem:[%s229 + $0x1c] sm:$0xf]
        %v247 = vld [vmem:[%s229 + $0x20] sm:$0xf]
        %v248 = vld [vmem:[%s229 + $0x24] sm:$0xf]
        %v249 = vld [vmem:[%s229 + $0x28] sm:$0xf]
        %v250 = vld [vmem:[%s229 + $0x2c] sm:$0xf]
        %v251 = vld [vmem:[%s229 + $0x30] sm:$0xf]
        %v252 = vld [vmem:[%s229 + $0x34] sm:$0xf]
        %v253 = vld [vmem:[%s229 + $0x38] sm:$0xf]
        %v254 = vld [vmem:[%s229 + $0x3c] sm:$0xf]
        %v255 = vld [vmem:[%s229 + $0x40] sm:$0xf]
        %v256 = vld [vmem:[%s229 + $0x44] sm:$0xf]
        %v257 = vld [vmem:[%s229 + $0x48] sm:$0xf]
        %v258 = vld [vmem:[%s229 + $0x4c] sm:$0xf]
        %v259 = vld [vmem:[%s229 + $0x50] sm:$0xf]
        %v260 = vld [vmem:[%s229 + $0x54] sm:$0xf]
        %v261 = vld [vmem:[%s229 + $0x58] sm:$0xf]
        %v262 = vld [vmem:[%s229 + $0x5c] sm:$0xf]
        %v263 = vld [vmem:[%s229 + $0x60] sm:$0xf]
        %v264 = vld [vmem:[%s229 + $0x64] sm:$0xf]
        %v265 = vld [vmem:[%s229 + $0x68] sm:$0xf]
        %v266 = vld [vmem:[%s229 + $0x6c] sm:$0xf]
        %v267 = vld [vmem:[%s229 + $0x70] sm:$0xf]
        %v268 = vld [vmem:[%s229 + $0x74] sm:$0xf]
        %v269 = vld [vmem:[%s229 + $0x78] sm:$0xf]
        %v270 = vld [vmem:[%s229 + $0x7c] sm:$0xf]
        %v271 = vld [vmem:[%s233] sm:$0xf]
        %v272 = vld [vmem:[%s233 + $0x4] sm:$0x3]
        %s273 = scalar_lea.vmem %s229, 8
        %v274 = vld [vmem:[%s273] sm:$0xf]
        %v275 = vld [vmem:[%s273 + $0x4] sm:$0xf]
        %v276 = vld [vmem:[%s273 + $0x8] sm:$0xf]
        %v277 = vld [vmem:[%s273 + $0xc] sm:$0xf]
        %v278 = vld [vmem:[%s273 + $0x10] sm:$0xf]
        %v279 = vld [vmem:[%s273 + $0x14] sm:$0xf]
        %v280 = vld [vmem:[%s273 + $0x18] sm:$0xf]
        %v281 = vld [vmem:[%s273 + $0x1c] sm:$0xf]
        %v282 = vld [vmem:[%s273 + $0x20] sm:$0xf]
        %v283 = vld [vmem:[%s273 + $0x24] sm:$0xf]
        %v284 = vld [vmem:[%s273 + $0x28] sm:$0xf]
        %v285 = vld [vmem:[%s273 + $0x2c] sm:$0xf]
        %v286 = vld [vmem:[%s273 + $0x30] sm:$0xf]
        %v287 = vld [vmem:[%s273 + $0x34] sm:$0xf]
        %v288 = vld [vmem:[%s273 + $0x38] sm:$0xf]
        %v289 = vld [vmem:[%s273 + $0x3c] sm:$0xf]
        %v290 = vld [vmem:[%s273 + $0x40] sm:$0xf]
        %v291 = vld [vmem:[%s273 + $0x44] sm:$0xf]
        %v292 = vld [vmem:[%s273 + $0x48] sm:$0xf]
        %v293 = vld [vmem:[%s273 + $0x4c] sm:$0xf]
        %v294 = vld [vmem:[%s273 + $0x50] sm:$0xf]
        %v295 = vld [vmem:[%s273 + $0x54] sm:$0xf]
        %v296 = vld [vmem:[%s273 + $0x58] sm:$0xf]
        %v297 = vld [vmem:[%s273 + $0x5c] sm:$0xf]
        %v298 = vld [vmem:[%s273 + $0x60] sm:$0xf]
        %v299 = vld [vmem:[%s273 + $0x64] sm:$0xf]
        %v300 = vld [vmem:[%s273 + $0x68] sm:$0xf]
        %v301 = vld [vmem:[%s273 + $0x6c] sm:$0xf]
        %v302 = vld [vmem:[%s273 + $0x70] sm:$0xf]
        %v303 = vld [vmem:[%s273 + $0x74] sm:$0xf]
        %v304 = vld [vmem:[%s273 + $0x78] sm:$0xf]
        %v305 = vld [vmem:[%s273 + $0x7c] sm:$0xf]
        %s306 = scalar_lea.vmem %s233, 8
        %v307 = vld [vmem:[%s306] sm:$0xf]
        %v308 = vld [vmem:[%s306 + $0x4] sm:$0x3]
        %v341 = vunpack.c.l.b16 %v274
        %v342 = vunpack.c.l.b16 %v275
        %v343 = vunpack.c.l.b16 %v276
        %v344 = vunpack.c.l.b16 %v277
        %v345 = vunpack.c.l.b16 %v278
        %v346 = vunpack.c.l.b16 %v279
        %v347 = vunpack.c.l.b16 %v280
        %v348 = vunpack.c.l.b16 %v281
        %v349 = vunpack.c.l.b16 %v282
        %v350 = vunpack.c.l.b16 %v283
        %v351 = vunpack.c.l.b16 %v284
        %v352 = vunpack.c.l.b16 %v285
        %v353 = vunpack.c.l.b16 %v286
        %v354 = vunpack.c.l.b16 %v287
        %v355 = vunpack.c.l.b16 %v288
        %v356 = vunpack.c.l.b16 %v289
        %v357 = vunpack.c.l.b16 %v290
        %v358 = vunpack.c.l.b16 %v291
        %v359 = vunpack.c.l.b16 %v292
        %v360 = vunpack.c.l.b16 %v293
        %v361 = vunpack.c.l.b16 %v294
        %v362 = vunpack.c.l.b16 %v295
        %v363 = vunpack.c.l.b16 %v296
        %v364 = vunpack.c.l.b16 %v297
        %v365 = vunpack.c.l.b16 %v298
        %v366 = vunpack.c.l.b16 %v299
        %v367 = vunpack.c.l.b16 %v300
        %v368 = vunpack.c.l.b16 %v301
        %v369 = vunpack.c.l.b16 %v302
        %v370 = vunpack.c.l.b16 %v303
        %v371 = vunpack.c.l.b16 %v304
        %v372 = vunpack.c.l.b16 %v305
        %v373 = vpack.c.b16 %v342, %v341
        %v374 = vpack.c.b16 %v344, %v343
        %v375 = vpack.c.b16 %v346, %v345
        %v376 = vpack.c.b16 %v348, %v347
        %v377 = vpack.c.b16 %v350, %v349
        %v378 = vpack.c.b16 %v352, %v351
        %v379 = vpack.c.b16 %v354, %v353
        %v380 = vpack.c.b16 %v356, %v355
        %v381 = vpack.c.b16 %v358, %v357
        %v382 = vpack.c.b16 %v360, %v359
        %v383 = vpack.c.b16 %v362, %v361
        %v384 = vpack.c.b16 %v364, %v363
        %v385 = vpack.c.b16 %v366, %v365
        %v386 = vpack.c.b16 %v368, %v367
        %v387 = vpack.c.b16 %v370, %v369
        %v388 = vpack.c.b16 %v372, %v371
        %v391 = vunpack.c.l.b16 %v307
        %v392 = vunpack.c.l.b16 %v308
        %v393 = vpack.c.b16 %v392, %v391
        %vm394 = vcmask 97280
        %v396 = vsel %vm394, %v373, 0
        %v399 = vsel %vm394, %v374, 0
        %v402 = vsel %vm394, %v375, 0
        %v405 = vsel %vm394, %v376, 0
        %v408 = vsel %vm394, %v377, 0
        %v411 = vsel %vm394, %v378, 0
        %v414 = vsel %vm394, %v379, 0
        %v417 = vsel %vm394, %v380, 0
        %v420 = vsel %vm394, %v381, 0
        %v423 = vsel %vm394, %v382, 0
        %v426 = vsel %vm394, %v383, 0
        %v429 = vsel %vm394, %v384, 0
        %v432 = vsel %vm394, %v385, 0
        %v435 = vsel %vm394, %v386, 0
        %v438 = vsel %vm394, %v387, 0
        %v441 = vsel %vm394, %v388, 0
        %vm443 = vcmask 1045504
        %v445 = vsel %vm443, %v393, 0
        %447 = vmatprep.subr.bf16.mxu0 0
        %448 = vmatpush1.bf16.msra.mxu0 0
        %449 = vmatprep.subr.bf16.mxu0 0
        %450 = vmatpush1.bf16.msra.mxu0 0
        %451 = vmatprep.subr.bf16.mxu0 0
        %452 = vmatpush1.bf16.msra.mxu0 0
        %453 = vmatprep.subr.bf16.mxu0 0
        %454 = vmatpush1.bf16.msra.mxu0 0
        %455 = vmatprep.subr.bf16.mxu0 0
        %456 = vmatpush1.bf16.msra.mxu0 0
        %457 = vmatprep.subr.bf16.mxu0 0
        %458 = vmatpush1.bf16.msra.mxu0 0
        %459 = vmatprep.subr.bf16.mxu0 0
        %460 = vmatpush1.bf16.msra.mxu0 0
        %461 = vmatprep.subr.bf16.mxu0 0
        %462 = vmatpush1.bf16.msra.mxu0 %v445
        %463 = vmatprep.subr.bf16.mxu0 0
        %464 = vmatpush2.bf16.msra.mxu0 0
        %465 = vmatprep.subr.bf16.mxu0 0
        %466 = vmatpush2.bf16.msra.mxu0 0
        %467 = vmatprep.subr.bf16.mxu0 0
        %468 = vmatpush2.bf16.msra.mxu0 0
        %469 = vmatprep.subr.bf16.mxu0 0
        %470 = vmatpush2.bf16.msra.mxu0 0
        %471 = vmatprep.subr.bf16.mxu0 0
        %472 = vmatpush2.bf16.msra.mxu0 0
        %473 = vmatprep.subr.bf16.mxu0 0
        %474 = vmatpush2.bf16.msra.mxu0 0
        %475 = vmatprep.subr.bf16.mxu0 0
        %476 = vmatpush2.bf16.msra.mxu0 0
        %477 = vmatprep.subr.bf16.mxu0 0
        %478 = vmatpush2.bf16.msra.mxu0 0
        %479 = vmatprep.mubr.bf16.mxu0 0
        %480 = vmatmul.mubr.bf16.gmra.mxu0 %v396
        %v481 = vpop.f32.mrf.mxu0
        %v482 = vadd.f32 0.0, %v481
        %v483 = vpop.f32.mrf.mxu0
        %v484 = vpop.f32.mrf.mxu0
        %v485 = vadd.f32 0.0, %v484
        %v486 = vpop.f32.mrf.mxu0
        %487 = vmatprep.mubr.bf16.mxu0 0
        %488 = vmatmul.mubr.bf16.gmra.mxu0 %v399
        %v489 = vpop.f32.mrf.mxu0
        %v490 = vadd.f32 0.0, %v489
        %v491 = vpop.f32.mrf.mxu0
        %v492 = vpop.f32.mrf.mxu0
        %v493 = vadd.f32 0.0, %v492
        %v494 = vpop.f32.mrf.mxu0
        %495 = vmatprep.mubr.bf16.mxu0 0
        %496 = vmatmul.mubr.bf16.gmra.mxu0 %v402
        %v497 = vpop.f32.mrf.mxu0
        %v498 = vadd.f32 0.0, %v497
        %v499 = vpop.f32.mrf.mxu0
        %v500 = vpop.f32.mrf.mxu0
        %v501 = vadd.f32 0.0, %v500
        %v502 = vpop.f32.mrf.mxu0
        %503 = vmatprep.mubr.bf16.mxu0 0
        %504 = vmatmul.mubr.bf16.gmra.mxu0 %v405
        %v505 = vpop.f32.mrf.mxu0
        %v506 = vadd.f32 0.0, %v505
        %v507 = vpop.f32.mrf.mxu0
        %v508 = vpop.f32.mrf.mxu0
        %v509 = vadd.f32 0.0, %v508
        %v510 = vpop.f32.mrf.mxu0
        %511 = vmatprep.mubr.bf16.mxu0 0
        %512 = vmatmul.mubr.bf16.gmra.mxu0 %v408
        %v513 = vpop.f32.mrf.mxu0
        %v514 = vadd.f32 0.0, %v513
        %v515 = vpop.f32.mrf.mxu0
        %v516 = vpop.f32.mrf.mxu0
        %v517 = vadd.f32 0.0, %v516
        %v518 = vpop.f32.mrf.mxu0
        %519 = vmatprep.mubr.bf16.mxu0 0
        %520 = vmatmul.mubr.bf16.gmra.mxu0 %v411
        %v521 = vpop.f32.mrf.mxu0
        %v522 = vadd.f32 0.0, %v521
        %v523 = vpop.f32.mrf.mxu0
        %v524 = vpop.f32.mrf.mxu0
        %v525 = vadd.f32 0.0, %v524
        %v526 = vpop.f32.mrf.mxu0
        %527 = vmatprep.mubr.bf16.mxu0 0
        %528 = vmatmul.mubr.bf16.gmra.mxu0 %v414
        %v529 = vpop.f32.mrf.mxu0
        %v530 = vadd.f32 0.0, %v529
        %v531 = vpop.f32.mrf.mxu0
        %v532 = vpop.f32.mrf.mxu0
        %v533 = vadd.f32 0.0, %v532
        %v534 = vpop.f32.mrf.mxu0
        %535 = vmatprep.mubr.bf16.mxu0 0
        %536 = vmatmul.mubr.bf16.gmra.mxu0 %v417
        %v537 = vpop.f32.mrf.mxu0
        %v538 = vadd.f32 0.0, %v537
        %v539 = vpop.f32.mrf.mxu0
        %v540 = vpop.f32.mrf.mxu0
        %v541 = vadd.f32 0.0, %v540
        %v542 = vpop.f32.mrf.mxu0
        %543 = vmatprep.mubr.bf16.mxu0 0
        %544 = vmatmul.mubr.bf16.gmra.mxu0 %v420
        %v545 = vpop.f32.mrf.mxu0
        %v546 = vadd.f32 0.0, %v545
        %v547 = vpop.f32.mrf.mxu0
        %v548 = vpop.f32.mrf.mxu0
        %v549 = vadd.f32 0.0, %v548
        %v550 = vpop.f32.mrf.mxu0
        %551 = vmatprep.mubr.bf16.mxu0 0
        %552 = vmatmul.mubr.bf16.gmra.mxu0 %v423
        %v553 = vpop.f32.mrf.mxu0
        %v554 = vadd.f32 0.0, %v553
        %v555 = vpop.f32.mrf.mxu0
        %v556 = vpop.f32.mrf.mxu0
        %v557 = vadd.f32 0.0, %v556
        %v558 = vpop.f32.mrf.mxu0
        %559 = vmatprep.mubr.bf16.mxu0 0
        %560 = vmatmul.mubr.bf16.gmra.mxu0 %v426
        %v561 = vpop.f32.mrf.mxu0
        %v562 = vadd.f32 0.0, %v561
        %v563 = vpop.f32.mrf.mxu0
        %v564 = vpop.f32.mrf.mxu0
        %v565 = vadd.f32 0.0, %v564
        %v566 = vpop.f32.mrf.mxu0
        %567 = vmatprep.mubr.bf16.mxu0 0
        %568 = vmatmul.mubr.bf16.gmra.mxu0 %v429
        %v569 = vpop.f32.mrf.mxu0
        %v570 = vadd.f32 0.0, %v569
        %v571 = vpop.f32.mrf.mxu0
        %v572 = vpop.f32.mrf.mxu0
        %v573 = vadd.f32 0.0, %v572
        %v574 = vpop.f32.mrf.mxu0
        %575 = vmatprep.mubr.bf16.mxu0 0
        %576 = vmatmul.mubr.bf16.gmra.mxu0 %v432
        %v577 = vpop.f32.mrf.mxu0
        %v578 = vadd.f32 0.0, %v577
        %v579 = vpop.f32.mrf.mxu0
        %v580 = vpop.f32.mrf.mxu0
        %v581 = vadd.f32 0.0, %v580
        %v582 = vpop.f32.mrf.mxu0
        %583 = vmatprep.mubr.bf16.mxu0 0
        %584 = vmatmul.mubr.bf16.gmra.mxu0 %v435
        %v585 = vpop.f32.mrf.mxu0
        %v586 = vadd.f32 0.0, %v585
        %v587 = vpop.f32.mrf.mxu0
        %v588 = vpop.f32.mrf.mxu0
        %v589 = vadd.f32 0.0, %v588
        %v590 = vpop.f32.mrf.mxu0
        %591 = vmatprep.mubr.bf16.mxu0 0
        %592 = vmatmul.mubr.bf16.gmra.mxu0 %v438
        %v593 = vpop.f32.mrf.mxu0
        %v594 = vadd.f32 0.0, %v593
        %v595 = vpop.f32.mrf.mxu0
        %v596 = vpop.f32.mrf.mxu0
        %v597 = vadd.f32 0.0, %v596
        %v598 = vpop.f32.mrf.mxu0
        %599 = vmatprep.mubr.bf16.mxu0 0
        %600 = vmatmul.mubr.bf16.gmra.mxu0 %v441
        %v601 = vpop.f32.mrf.mxu0
        %v602 = vadd.f32 0.0, %v601
        %v603 = vpop.f32.mrf.mxu0
        %v604 = vpop.f32.mrf.mxu0
        %v605 = vadd.f32 0.0, %v604
        %v606 = vpop.f32.mrf.mxu0
        %607 = vdwg.mxu0
        %v640 = vunpack.c.l.b16 %v239
        %v641 = vunpack.c.l.b16 %v240
        %v642 = vunpack.c.l.b16 %v241
        %v643 = vunpack.c.l.b16 %v242
        %v644 = vunpack.c.l.b16 %v243
        %v645 = vunpack.c.l.b16 %v244
        %v646 = vunpack.c.l.b16 %v245
        %v647 = vunpack.c.l.b16 %v246
        %v648 = vunpack.c.l.b16 %v247
        %v649 = vunpack.c.l.b16 %v248
        %v650 = vunpack.c.l.b16 %v249
        %v651 = vunpack.c.l.b16 %v250
        %v652 = vunpack.c.l.b16 %v251
        %v653 = vunpack.c.l.b16 %v252
        %v654 = vunpack.c.l.b16 %v253
        %v655 = vunpack.c.l.b16 %v254
        %v656 = vunpack.c.l.b16 %v255
        %v657 = vunpack.c.l.b16 %v256
        %v658 = vunpack.c.l.b16 %v257
        %v659 = vunpack.c.l.b16 %v258
        %v660 = vunpack.c.l.b16 %v259
        %v661 = vunpack.c.l.b16 %v260
        %v662 = vunpack.c.l.b16 %v261
        %v663 = vunpack.c.l.b16 %v262
        %v664 = vunpack.c.l.b16 %v263
        %v665 = vunpack.c.l.b16 %v264
        %v666 = vunpack.c.l.b16 %v265
        %v667 = vunpack.c.l.b16 %v266
        %v668 = vunpack.c.l.b16 %v267
        %v669 = vunpack.c.l.b16 %v268
        %v670 = vunpack.c.l.b16 %v269
        %v671 = vunpack.c.l.b16 %v270
        %v672 = vpack.c.b16 %v641, %v640
        %v673 = vpack.c.b16 %v643, %v642
        %v674 = vpack.c.b16 %v645, %v644
        %v675 = vpack.c.b16 %v647, %v646
        %v676 = vpack.c.b16 %v649, %v648
        %v677 = vpack.c.b16 %v651, %v650
        %v678 = vpack.c.b16 %v653, %v652
        %v679 = vpack.c.b16 %v655, %v654
        %v680 = vpack.c.b16 %v657, %v656
        %v681 = vpack.c.b16 %v659, %v658
        %v682 = vpack.c.b16 %v661, %v660
        %v683 = vpack.c.b16 %v663, %v662
        %v684 = vpack.c.b16 %v665, %v664
        %v685 = vpack.c.b16 %v667, %v666
        %v686 = vpack.c.b16 %v669, %v668
        %v687 = vpack.c.b16 %v671, %v670
        %v690 = vunpack.c.l.b16 %v271
        %v691 = vunpack.c.l.b16 %v272
        %v692 = vpack.c.b16 %v691, %v690
        %v694 = vsel %vm394, %v672, 0
        %v697 = vsel %vm394, %v673, 0
        %v700 = vsel %vm394, %v674, 0
        %v703 = vsel %vm394, %v675, 0
        %v706 = vsel %vm394, %v676, 0
        %v709 = vsel %vm394, %v677, 0
        %v712 = vsel %vm394, %v678, 0
        %v715 = vsel %vm394, %v679, 0
        %v718 = vsel %vm394, %v680, 0
        %v721 = vsel %vm394, %v681, 0
        %v724 = vsel %vm394, %v682, 0
        %v727 = vsel %vm394, %v683, 0
        %v730 = vsel %vm394, %v684, 0
        %v733 = vsel %vm394, %v685, 0
        %v736 = vsel %vm394, %v686, 0
        %v739 = vsel %vm394, %v687, 0
        %v742 = vsel %vm443, %v692, 0
        %744 = vmatprep.subr.bf16.mxu0 0
        %745 = vmatpush1.bf16.msra.mxu0 0
        %746 = vmatprep.subr.bf16.mxu0 0
        %747 = vmatpush1.bf16.msra.mxu0 0
        %748 = vmatprep.subr.bf16.mxu0 0
        %749 = vmatpush1.bf16.msra.mxu0 0
        %750 = vmatprep.subr.bf16.mxu0 0
        %751 = vmatpush1.bf16.msra.mxu0 0
        %752 = vmatprep.subr.bf16.mxu0 0
        %753 = vmatpush1.bf16.msra.mxu0 0
        %754 = vmatprep.subr.bf16.mxu0 0
        %755 = vmatpush1.bf16.msra.mxu0 0
        %756 = vmatprep.subr.bf16.mxu0 0
        %757 = vmatpush1.bf16.msra.mxu0 0
        %758 = vmatprep.subr.bf16.mxu0 0
        %759 = vmatpush1.bf16.msra.mxu0 %v742
        %760 = vmatprep.subr.bf16.mxu0 0
        %761 = vmatpush2.bf16.msra.mxu0 0
        %762 = vmatprep.subr.bf16.mxu0 0
        %763 = vmatpush2.bf16.msra.mxu0 0
        %764 = vmatprep.subr.bf16.mxu0 0
        %765 = vmatpush2.bf16.msra.mxu0 0
        %766 = vmatprep.subr.bf16.mxu0 0
        %767 = vmatpush2.bf16.msra.mxu0 0
        %768 = vmatprep.subr.bf16.mxu0 0
        %769 = vmatpush2.bf16.msra.mxu0 0
        %770 = vmatprep.subr.bf16.mxu0 0
        %771 = vmatpush2.bf16.msra.mxu0 0
        %772 = vmatprep.subr.bf16.mxu0 0
        %773 = vmatpush2.bf16.msra.mxu0 0
        %774 = vmatprep.subr.bf16.mxu0 0
        %775 = vmatpush2.bf16.msra.mxu0 0
        %776 = vmatprep.mubr.bf16.mxu0 0
        %777 = vmatmul.mubr.bf16.gmra.mxu0 %v694
        %v778 = vpop.f32.mrf.mxu0
        %v779 = vadd.f32 %v482, %v778
        %v780 = vpop.f32.mrf.mxu0
        %v781 = vpop.f32.mrf.mxu0
        %v782 = vadd.f32 %v485, %v781
        %v783 = vpop.f32.mrf.mxu0
        %784 = vmatprep.mubr.bf16.mxu0 0
        %785 = vmatmul.mubr.bf16.gmra.mxu0 %v697
        %v786 = vpop.f32.mrf.mxu0
        %v787 = vadd.f32 %v490, %v786
        %v788 = vpop.f32.mrf.mxu0
        %v789 = vpop.f32.mrf.mxu0
        %v790 = vadd.f32 %v493, %v789
        %v791 = vpop.f32.mrf.mxu0
        %792 = vmatprep.mubr.bf16.mxu0 0
        %793 = vmatmul.mubr.bf16.gmra.mxu0 %v700
        %v794 = vpop.f32.mrf.mxu0
        %v795 = vadd.f32 %v498, %v794
        %v796 = vpop.f32.mrf.mxu0
        %v797 = vpop.f32.mrf.mxu0
        %v798 = vadd.f32 %v501, %v797
        %v799 = vpop.f32.mrf.mxu0
        %800 = vmatprep.mubr.bf16.mxu0 0
        %801 = vmatmul.mubr.bf16.gmra.mxu0 %v703
        %v802 = vpop.f32.mrf.mxu0
        %v803 = vadd.f32 %v506, %v802
        %v804 = vpop.f32.mrf.mxu0
        %v805 = vpop.f32.mrf.mxu0
        %v806 = vadd.f32 %v509, %v805
        %v807 = vpop.f32.mrf.mxu0
        %808 = vmatprep.mubr.bf16.mxu0 0
        %809 = vmatmul.mubr.bf16.gmra.mxu0 %v706
        %v810 = vpop.f32.mrf.mxu0
        %v811 = vadd.f32 %v514, %v810
        %v812 = vpop.f32.mrf.mxu0
        %v813 = vpop.f32.mrf.mxu0
        %v814 = vadd.f32 %v517, %v813
        %v815 = vpop.f32.mrf.mxu0
        %816 = vmatprep.mubr.bf16.mxu0 0
        %817 = vmatmul.mubr.bf16.gmra.mxu0 %v709
        %v818 = vpop.f32.mrf.mxu0
        %v819 = vadd.f32 %v522, %v818
        %v820 = vpop.f32.mrf.mxu0
        %v821 = vpop.f32.mrf.mxu0
        %v822 = vadd.f32 %v525, %v821
        %v823 = vpop.f32.mrf.mxu0
        %824 = vmatprep.mubr.bf16.mxu0 0
        %825 = vmatmul.mubr.bf16.gmra.mxu0 %v712
        %v826 = vpop.f32.mrf.mxu0
        %v827 = vadd.f32 %v530, %v826
        %v828 = vpop.f32.mrf.mxu0
        %v829 = vpop.f32.mrf.mxu0
        %v830 = vadd.f32 %v533, %v829
        %v831 = vpop.f32.mrf.mxu0
        %832 = vmatprep.mubr.bf16.mxu0 0
        %833 = vmatmul.mubr.bf16.gmra.mxu0 %v715
        %v834 = vpop.f32.mrf.mxu0
        %v835 = vadd.f32 %v538, %v834
        %v836 = vpop.f32.mrf.mxu0
        %v837 = vpop.f32.mrf.mxu0
        %v838 = vadd.f32 %v541, %v837
        %v839 = vpop.f32.mrf.mxu0
        %840 = vmatprep.mubr.bf16.mxu0 0
        %841 = vmatmul.mubr.bf16.gmra.mxu0 %v718
        %v842 = vpop.f32.mrf.mxu0
        %v843 = vadd.f32 %v546, %v842
        %v844 = vpop.f32.mrf.mxu0
        %v845 = vpop.f32.mrf.mxu0
        %v846 = vadd.f32 %v549, %v845
        %v847 = vpop.f32.mrf.mxu0
        %848 = vmatprep.mubr.bf16.mxu0 0
        %849 = vmatmul.mubr.bf16.gmra.mxu0 %v721
        %v850 = vpop.f32.mrf.mxu0
        %v851 = vadd.f32 %v554, %v850
        %v852 = vpop.f32.mrf.mxu0
        %v853 = vpop.f32.mrf.mxu0
        %v854 = vadd.f32 %v557, %v853
        %v855 = vpop.f32.mrf.mxu0
        %856 = vmatprep.mubr.bf16.mxu0 0
        %857 = vmatmul.mubr.bf16.gmra.mxu0 %v724
        %v858 = vpop.f32.mrf.mxu0
        %v859 = vadd.f32 %v562, %v858
        %v860 = vpop.f32.mrf.mxu0
        %v861 = vpop.f32.mrf.mxu0
        %v862 = vadd.f32 %v565, %v861
        %v863 = vpop.f32.mrf.mxu0
        %864 = vmatprep.mubr.bf16.mxu0 0
        %865 = vmatmul.mubr.bf16.gmra.mxu0 %v727
        %v866 = vpop.f32.mrf.mxu0
        %v867 = vadd.f32 %v570, %v866
        %v868 = vpop.f32.mrf.mxu0
        %v869 = vpop.f32.mrf.mxu0
        %v870 = vadd.f32 %v573, %v869
        %v871 = vpop.f32.mrf.mxu0
        %872 = vmatprep.mubr.bf16.mxu0 0
        %873 = vmatmul.mubr.bf16.gmra.mxu0 %v730
        %v874 = vpop.f32.mrf.mxu0
        %v875 = vadd.f32 %v578, %v874
        %v876 = vpop.f32.mrf.mxu0
        %v877 = vpop.f32.mrf.mxu0
        %v878 = vadd.f32 %v581, %v877
        %v879 = vpop.f32.mrf.mxu0
        %880 = vmatprep.mubr.bf16.mxu0 0
        %881 = vmatmul.mubr.bf16.gmra.mxu0 %v733
        %v882 = vpop.f32.mrf.mxu0
        %v883 = vadd.f32 %v586, %v882
        %v884 = vpop.f32.mrf.mxu0
        %v885 = vpop.f32.mrf.mxu0
        %v886 = vadd.f32 %v589, %v885
        %v887 = vpop.f32.mrf.mxu0
        %888 = vmatprep.mubr.bf16.mxu0 0
        %889 = vmatmul.mubr.bf16.gmra.mxu0 %v736
        %v890 = vpop.f32.mrf.mxu0
        %v891 = vadd.f32 %v594, %v890
        %v892 = vpop.f32.mrf.mxu0
        %v893 = vpop.f32.mrf.mxu0
        %v894 = vadd.f32 %v597, %v893
        %v895 = vpop.f32.mrf.mxu0
        %896 = vmatprep.mubr.bf16.mxu0 0
        %897 = vmatmul.mubr.bf16.gmra.mxu0 %v739
        %v898 = vpop.f32.mrf.mxu0
        %v899 = vadd.f32 %v602, %v898
        %v900 = vpop.f32.mrf.mxu0
        %v901 = vpop.f32.mrf.mxu0
        %v902 = vadd.f32 %v605, %v901
        %v903 = vpop.f32.mrf.mxu0
        %904 = vdwg.mxu0
        %s905 = scalar_lea.vmem %s229, 16
        %v906 = vld [vmem:[%s905] sm:$0xf]
        %v907 = vld [vmem:[%s905 + $0x4] sm:$0xf]
        %v908 = vld [vmem:[%s905 + $0x8] sm:$0xf]
        %v909 = vld [vmem:[%s905 + $0xc] sm:$0xf]
        %v910 = vld [vmem:[%s905 + $0x10] sm:$0xf]
        %v911 = vld [vmem:[%s905 + $0x14] sm:$0xf]
        %v912 = vld [vmem:[%s905 + $0x18] sm:$0xf]
        %v913 = vld [vmem:[%s905 + $0x1c] sm:$0xf]
        %v914 = vld [vmem:[%s905 + $0x20] sm:$0xf]
        %v915 = vld [vmem:[%s905 + $0x24] sm:$0xf]
        %v916 = vld [vmem:[%s905 + $0x28] sm:$0xf]
        %v917 = vld [vmem:[%s905 + $0x2c] sm:$0xf]
        %v918 = vld [vmem:[%s905 + $0x30] sm:$0xf]
        %v919 = vld [vmem:[%s905 + $0x34] sm:$0xf]
        %v920 = vld [vmem:[%s905 + $0x38] sm:$0xf]
        %v921 = vld [vmem:[%s905 + $0x3c] sm:$0xf]
        %v922 = vld [vmem:[%s905 + $0x40] sm:$0xf]
        %v923 = vld [vmem:[%s905 + $0x44] sm:$0xf]
        %v924 = vld [vmem:[%s905 + $0x48] sm:$0xf]
        %v925 = vld [vmem:[%s905 + $0x4c] sm:$0xf]
        %v926 = vld [vmem:[%s905 + $0x50] sm:$0xf]
        %v927 = vld [vmem:[%s905 + $0x54] sm:$0xf]
        %v928 = vld [vmem:[%s905 + $0x58] sm:$0xf]
        %v929 = vld [vmem:[%s905 + $0x5c] sm:$0xf]
        %v930 = vld [vmem:[%s905 + $0x60] sm:$0xf]
        %v931 = vld [vmem:[%s905 + $0x64] sm:$0xf]
        %v932 = vld [vmem:[%s905 + $0x68] sm:$0xf]
        %v933 = vld [vmem:[%s905 + $0x6c] sm:$0xf]
        %v934 = vld [vmem:[%s905 + $0x70] sm:$0xf]
        %v935 = vld [vmem:[%s905 + $0x74] sm:$0xf]
        %v936 = vld [vmem:[%s905 + $0x78] sm:$0xf]
        %v937 = vld [vmem:[%s905 + $0x7c] sm:$0xf]
        %s938 = scalar_lea.vmem %s233, 16
        %v939 = vld [vmem:[%s938] sm:$0xf]
        %v940 = vld [vmem:[%s938 + $0x4] sm:$0x3]
        %v973 = vunpack.c.l.b16 %v906
        %v974 = vunpack.c.l.b16 %v907
        %v975 = vunpack.c.l.b16 %v908
        %v976 = vunpack.c.l.b16 %v909
        %v977 = vunpack.c.l.b16 %v910
        %v978 = vunpack.c.l.b16 %v911
        %v979 = vunpack.c.l.b16 %v912
        %v980 = vunpack.c.l.b16 %v913
        %v981 = vunpack.c.l.b16 %v914
        %v982 = vunpack.c.l.b16 %v915
        %v983 = vunpack.c.l.b16 %v916
        %v984 = vunpack.c.l.b16 %v917
        %v985 = vunpack.c.l.b16 %v918
        %v986 = vunpack.c.l.b16 %v919
        %v987 = vunpack.c.l.b16 %v920
        %v988 = vunpack.c.l.b16 %v921
        %v989 = vunpack.c.l.b16 %v922
        %v990 = vunpack.c.l.b16 %v923
        %v991 = vunpack.c.l.b16 %v924
        %v992 = vunpack.c.l.b16 %v925
        %v993 = vunpack.c.l.b16 %v926
        %v994 = vunpack.c.l.b16 %v927
        %v995 = vunpack.c.l.b16 %v928
        %v996 = vunpack.c.l.b16 %v929
        %v997 = vunpack.c.l.b16 %v930
        %v998 = vunpack.c.l.b16 %v931
        %v999 = vunpack.c.l.b16 %v932
        %v1000 = vunpack.c.l.b16 %v933
        %v1001 = vunpack.c.l.b16 %v934
        %v1002 = vunpack.c.l.b16 %v935
        %v1003 = vunpack.c.l.b16 %v936
        %v1004 = vunpack.c.l.b16 %v937
        %v1005 = vpack.c.b16 %v974, %v973
        %v1006 = vpack.c.b16 %v976, %v975
        %v1007 = vpack.c.b16 %v978, %v977
        %v1008 = vpack.c.b16 %v980, %v979
        %v1009 = vpack.c.b16 %v982, %v981
        %v1010 = vpack.c.b16 %v984, %v983
        %v1011 = vpack.c.b16 %v986, %v985
        %v1012 = vpack.c.b16 %v988, %v987
        %v1013 = vpack.c.b16 %v990, %v989
        %v1014 = vpack.c.b16 %v992, %v991
        %v1015 = vpack.c.b16 %v994, %v993
        %v1016 = vpack.c.b16 %v996, %v995
        %v1017 = vpack.c.b16 %v998, %v997
        %v1018 = vpack.c.b16 %v1000, %v999
        %v1019 = vpack.c.b16 %v1002, %v1001
        %v1020 = vpack.c.b16 %v1004, %v1003
        %v1023 = vunpack.c.l.b16 %v939
        %v1024 = vunpack.c.l.b16 %v940
        %v1025 = vpack.c.b16 %v1024, %v1023
        %v1027 = vsel %vm394, %v1005, 0
        %v1030 = vsel %vm394, %v1006, 0
        %v1033 = vsel %vm394, %v1007, 0
        %v1036 = vsel %vm394, %v1008, 0
        %v1039 = vsel %vm394, %v1009, 0
        %v1042 = vsel %vm394, %v1010, 0
        %v1045 = vsel %vm394, %v1011, 0
        %v1048 = vsel %vm394, %v1012, 0
        %v1051 = vsel %vm394, %v1013, 0
        %v1054 = vsel %vm394, %v1014, 0
        %v1057 = vsel %vm394, %v1015, 0
        %v1060 = vsel %vm394, %v1016, 0
        %v1063 = vsel %vm394, %v1017, 0
        %v1066 = vsel %vm394, %v1018, 0
        %v1069 = vsel %vm394, %v1019, 0
        %v1072 = vsel %vm394, %v1020, 0
        %v1075 = vsel %vm443, %v1025, 0
        %1077 = vmatprep.subr.bf16.mxu0 0
        %1078 = vmatpush1.bf16.msra.mxu0 0
        %1079 = vmatprep.subr.bf16.mxu0 0
        %1080 = vmatpush1.bf16.msra.mxu0 0
        %1081 = vmatprep.subr.bf16.mxu0 0
        %1082 = vmatpush1.bf16.msra.mxu0 0
        %1083 = vmatprep.subr.bf16.mxu0 0
        %1084 = vmatpush1.bf16.msra.mxu0 0
        %1085 = vmatprep.subr.bf16.mxu0 0
        %1086 = vmatpush1.bf16.msra.mxu0 0
        %1087 = vmatprep.subr.bf16.mxu0 0
        %1088 = vmatpush1.bf16.msra.mxu0 0
        %1089 = vmatprep.subr.bf16.mxu0 0
        %1090 = vmatpush1.bf16.msra.mxu0 0
        %1091 = vmatprep.subr.bf16.mxu0 0
        %1092 = vmatpush1.bf16.msra.mxu0 %v1075
        %1093 = vmatprep.subr.bf16.mxu0 0
        %1094 = vmatpush2.bf16.msra.mxu0 0
        %1095 = vmatprep.subr.bf16.mxu0 0
        %1096 = vmatpush2.bf16.msra.mxu0 0
        %1097 = vmatprep.subr.bf16.mxu0 0
        %1098 = vmatpush2.bf16.msra.mxu0 0
        %1099 = vmatprep.subr.bf16.mxu0 0
        %1100 = vmatpush2.bf16.msra.mxu0 0
        %1101 = vmatprep.subr.bf16.mxu0 0
        %1102 = vmatpush2.bf16.msra.mxu0 0
        %1103 = vmatprep.subr.bf16.mxu0 0
        %1104 = vmatpush2.bf16.msra.mxu0 0
        %1105 = vmatprep.subr.bf16.mxu0 0
        %1106 = vmatpush2.bf16.msra.mxu0 0
        %1107 = vmatprep.subr.bf16.mxu0 0
        %1108 = vmatpush2.bf16.msra.mxu0 0
        %1109 = vmatprep.mubr.bf16.mxu0 0
        %1110 = vmatmul.mubr.bf16.gmra.mxu0 %v1027
        %v1111 = vpop.f32.mrf.mxu0
        %v1112 = vadd.f32 0.0, %v1111
        %v1113 = vpop.f32.mrf.mxu0
        %v1114 = vpop.f32.mrf.mxu0
        %v1115 = vadd.f32 0.0, %v1114
        %v1116 = vpop.f32.mrf.mxu0
        %1117 = vmatprep.mubr.bf16.mxu0 0
        %1118 = vmatmul.mubr.bf16.gmra.mxu0 %v1030
        %v1119 = vpop.f32.mrf.mxu0
        %v1120 = vadd.f32 0.0, %v1119
        %v1121 = vpop.f32.mrf.mxu0
        %v1122 = vpop.f32.mrf.mxu0
        %v1123 = vadd.f32 0.0, %v1122
        %v1124 = vpop.f32.mrf.mxu0
        %1125 = vmatprep.mubr.bf16.mxu0 0
        %1126 = vmatmul.mubr.bf16.gmra.mxu0 %v1033
        %v1127 = vpop.f32.mrf.mxu0
        %v1128 = vadd.f32 0.0, %v1127
        %v1129 = vpop.f32.mrf.mxu0
        %v1130 = vpop.f32.mrf.mxu0
        %v1131 = vadd.f32 0.0, %v1130
        %v1132 = vpop.f32.mrf.mxu0
        %1133 = vmatprep.mubr.bf16.mxu0 0
        %1134 = vmatmul.mubr.bf16.gmra.mxu0 %v1036
        %v1135 = vpop.f32.mrf.mxu0
        %v1136 = vadd.f32 0.0, %v1135
        %v1137 = vpop.f32.mrf.mxu0
        %v1138 = vpop.f32.mrf.mxu0
        %v1139 = vadd.f32 0.0, %v1138
        %v1140 = vpop.f32.mrf.mxu0
        %1141 = vmatprep.mubr.bf16.mxu0 0
        %1142 = vmatmul.mubr.bf16.gmra.mxu0 %v1039
        %v1143 = vpop.f32.mrf.mxu0
        %v1144 = vadd.f32 0.0, %v1143
        %v1145 = vpop.f32.mrf.mxu0
        %v1146 = vpop.f32.mrf.mxu0
        %v1147 = vadd.f32 0.0, %v1146
        %v1148 = vpop.f32.mrf.mxu0
        %1149 = vmatprep.mubr.bf16.mxu0 0
        %1150 = vmatmul.mubr.bf16.gmra.mxu0 %v1042
        %v1151 = vpop.f32.mrf.mxu0
        %v1152 = vadd.f32 0.0, %v1151
        %v1153 = vpop.f32.mrf.mxu0
        %v1154 = vpop.f32.mrf.mxu0
        %v1155 = vadd.f32 0.0, %v1154
        %v1156 = vpop.f32.mrf.mxu0
        %1157 = vmatprep.mubr.bf16.mxu0 0
        %1158 = vmatmul.mubr.bf16.gmra.mxu0 %v1045
        %v1159 = vpop.f32.mrf.mxu0
        %v1160 = vadd.f32 0.0, %v1159
        %v1161 = vpop.f32.mrf.mxu0
        %v1162 = vpop.f32.mrf.mxu0
        %v1163 = vadd.f32 0.0, %v1162
        %v1164 = vpop.f32.mrf.mxu0
        %1165 = vmatprep.mubr.bf16.mxu0 0
        %1166 = vmatmul.mubr.bf16.gmra.mxu0 %v1048
        %v1167 = vpop.f32.mrf.mxu0
        %v1168 = vadd.f32 0.0, %v1167
        %v1169 = vpop.f32.mrf.mxu0
        %v1170 = vpop.f32.mrf.mxu0
        %v1171 = vadd.f32 0.0, %v1170
        %v1172 = vpop.f32.mrf.mxu0
        %1173 = vmatprep.mubr.bf16.mxu0 0
        %1174 = vmatmul.mubr.bf16.gmra.mxu0 %v1051
        %v1175 = vpop.f32.mrf.mxu0
        %v1176 = vadd.f32 0.0, %v1175
        %v1177 = vpop.f32.mrf.mxu0
        %v1178 = vpop.f32.mrf.mxu0
        %v1179 = vadd.f32 0.0, %v1178
        %v1180 = vpop.f32.mrf.mxu0
        %1181 = vmatprep.mubr.bf16.mxu0 0
        %1182 = vmatmul.mubr.bf16.gmra.mxu0 %v1054
        %v1183 = vpop.f32.mrf.mxu0
        %v1184 = vadd.f32 0.0, %v1183
        %v1185 = vpop.f32.mrf.mxu0
        %v1186 = vpop.f32.mrf.mxu0
        %v1187 = vadd.f32 0.0, %v1186
        %v1188 = vpop.f32.mrf.mxu0
        %1189 = vmatprep.mubr.bf16.mxu0 0
        %1190 = vmatmul.mubr.bf16.gmra.mxu0 %v1057
        %v1191 = vpop.f32.mrf.mxu0
        %v1192 = vadd.f32 0.0, %v1191
        %v1193 = vpop.f32.mrf.mxu0
        %v1194 = vpop.f32.mrf.mxu0
        %v1195 = vadd.f32 0.0, %v1194
        %v1196 = vpop.f32.mrf.mxu0
        %1197 = vmatprep.mubr.bf16.mxu0 0
        %1198 = vmatmul.mubr.bf16.gmra.mxu0 %v1060
        %v1199 = vpop.f32.mrf.mxu0
        %v1200 = vadd.f32 0.0, %v1199
        %v1201 = vpop.f32.mrf.mxu0
        %v1202 = vpop.f32.mrf.mxu0
        %v1203 = vadd.f32 0.0, %v1202
        %v1204 = vpop.f32.mrf.mxu0
        %1205 = vmatprep.mubr.bf16.mxu0 0
        %1206 = vmatmul.mubr.bf16.gmra.mxu0 %v1063
        %v1207 = vpop.f32.mrf.mxu0
        %v1208 = vadd.f32 0.0, %v1207
        %v1209 = vpop.f32.mrf.mxu0
        %v1210 = vpop.f32.mrf.mxu0
        %v1211 = vadd.f32 0.0, %v1210
        %v1212 = vpop.f32.mrf.mxu0
        %1213 = vmatprep.mubr.bf16.mxu0 0
        %1214 = vmatmul.mubr.bf16.gmra.mxu0 %v1066
        %v1215 = vpop.f32.mrf.mxu0
        %v1216 = vadd.f32 0.0, %v1215
        %v1217 = vpop.f32.mrf.mxu0
        %v1218 = vpop.f32.mrf.mxu0
        %v1219 = vadd.f32 0.0, %v1218
        %v1220 = vpop.f32.mrf.mxu0
        %1221 = vmatprep.mubr.bf16.mxu0 0
        %1222 = vmatmul.mubr.bf16.gmra.mxu0 %v1069
        %v1223 = vpop.f32.mrf.mxu0
        %v1224 = vadd.f32 0.0, %v1223
        %v1225 = vpop.f32.mrf.mxu0
        %v1226 = vpop.f32.mrf.mxu0
        %v1227 = vadd.f32 0.0, %v1226
        %v1228 = vpop.f32.mrf.mxu0
        %1229 = vmatprep.mubr.bf16.mxu0 0
        %1230 = vmatmul.mubr.bf16.gmra.mxu0 %v1072
        %v1231 = vpop.f32.mrf.mxu0
        %v1232 = vadd.f32 0.0, %v1231
        %v1233 = vpop.f32.mrf.mxu0
        %v1234 = vpop.f32.mrf.mxu0
        %v1235 = vadd.f32 0.0, %v1234
        %v1236 = vpop.f32.mrf.mxu0
        %1237 = vdwg.mxu0
        %v1238 = vadd.f32 %v779, %v1112
        %v1239 = vadd.f32 %v782, %v1115
        %v1240 = vadd.f32 %v787, %v1120
        %v1241 = vadd.f32 %v790, %v1123
        %v1242 = vadd.f32 %v795, %v1128
        %v1243 = vadd.f32 %v798, %v1131
        %v1244 = vadd.f32 %v803, %v1136
        %v1245 = vadd.f32 %v806, %v1139
        %v1246 = vadd.f32 %v811, %v1144
        %v1247 = vadd.f32 %v814, %v1147
        %v1248 = vadd.f32 %v819, %v1152
        %v1249 = vadd.f32 %v822, %v1155
        %v1250 = vadd.f32 %v827, %v1160
        %v1251 = vadd.f32 %v830, %v1163
        %v1252 = vadd.f32 %v835, %v1168
        %v1253 = vadd.f32 %v838, %v1171
        %v1254 = vadd.f32 %v843, %v1176
        %v1255 = vadd.f32 %v846, %v1179
        %v1256 = vadd.f32 %v851, %v1184
        %v1257 = vadd.f32 %v854, %v1187
        %v1258 = vadd.f32 %v859, %v1192
        %v1259 = vadd.f32 %v862, %v1195
        %v1260 = vadd.f32 %v867, %v1200
        %v1261 = vadd.f32 %v870, %v1203
        %v1262 = vadd.f32 %v875, %v1208
        %v1263 = vadd.f32 %v878, %v1211
        %v1264 = vadd.f32 %v883, %v1216
        %v1265 = vadd.f32 %v886, %v1219
        %v1266 = vadd.f32 %v891, %v1224
        %v1267 = vadd.f32 %v894, %v1227
        %v1268 = vadd.f32 %v899, %v1232
        %v1269 = vadd.f32 %v902, %v1235
        %v1270 = vld [vmem:[%s236] sm:$0x1]
        %v1272 = vlaneseq
        %v1273 = vshrl.u32 %v1272, 7
        %v1274 = vsub.s32 0, %v1273
        %v1275 = vrot.slane %v1270, %v1274
        %v1277 = vadd.f32 %v1238, %v1275
        %v1278 = vadd.f32 %v1239, %v1275
        %v1279 = vadd.f32 %v1240, %v1275
        %v1280 = vadd.f32 %v1241, %v1275
        %v1281 = vadd.f32 %v1242, %v1275
        %v1282 = vadd.f32 %v1243, %v1275
        %v1283 = vadd.f32 %v1244, %v1275
        %v1284 = vadd.f32 %v1245, %v1275
        %v1285 = vadd.f32 %v1246, %v1275
        %v1286 = vadd.f32 %v1247, %v1275
        %v1287 = vadd.f32 %v1248, %v1275
        %v1288 = vadd.f32 %v1249, %v1275
        %v1289 = vadd.f32 %v1250, %v1275
        %v1290 = vadd.f32 %v1251, %v1275
        %v1291 = vadd.f32 %v1252, %v1275
        %v1292 = vadd.f32 %v1253, %v1275
        %v1293 = vadd.f32 %v1254, %v1275
        %v1294 = vadd.f32 %v1255, %v1275
        %v1295 = vadd.f32 %v1256, %v1275
        %v1296 = vadd.f32 %v1257, %v1275
        %v1297 = vadd.f32 %v1258, %v1275
        %v1298 = vadd.f32 %v1259, %v1275
        %v1299 = vadd.f32 %v1260, %v1275
        %v1300 = vadd.f32 %v1261, %v1275
        %v1301 = vadd.f32 %v1262, %v1275
        %v1302 = vadd.f32 %v1263, %v1275
        %v1303 = vadd.f32 %v1264, %v1275
        %v1304 = vadd.f32 %v1265, %v1275
        %v1305 = vadd.f32 %v1266, %v1275
        %v1306 = vadd.f32 %v1267, %v1275
        %v1307 = vadd.f32 %v1268, %v1275
        %v1308 = vadd.f32 %v1269, %v1275
        %v1309 = vsub.f32 0.0, %v1277
        %v1310 = vsub.f32 0.0, %v1278
        %v1311 = vsub.f32 0.0, %v1279
        %v1312 = vsub.f32 0.0, %v1280
        %v1313 = vsub.f32 0.0, %v1281
        %v1314 = vsub.f32 0.0, %v1282
        %v1315 = vsub.f32 0.0, %v1283
        %v1316 = vsub.f32 0.0, %v1284
        %v1317 = vsub.f32 0.0, %v1285
        %v1318 = vsub.f32 0.0, %v1286
        %v1319 = vsub.f32 0.0, %v1287
        %v1320 = vsub.f32 0.0, %v1288
        %v1321 = vsub.f32 0.0, %v1289
        %v1322 = vsub.f32 0.0, %v1290
        %v1323 = vsub.f32 0.0, %v1291
        %v1324 = vsub.f32 0.0, %v1292
        %v1325 = vsub.f32 0.0, %v1293
        %v1326 = vsub.f32 0.0, %v1294
        %v1327 = vsub.f32 0.0, %v1295
        %v1328 = vsub.f32 0.0, %v1296
        %v1329 = vsub.f32 0.0, %v1297
        %v1330 = vsub.f32 0.0, %v1298
        %v1331 = vsub.f32 0.0, %v1299
        %v1332 = vsub.f32 0.0, %v1300
        %v1333 = vsub.f32 0.0, %v1301
        %v1334 = vsub.f32 0.0, %v1302
        %v1335 = vsub.f32 0.0, %v1303
        %v1336 = vsub.f32 0.0, %v1304
        %v1337 = vsub.f32 0.0, %v1305
        %v1338 = vsub.f32 0.0, %v1306
        %v1339 = vsub.f32 0.0, %v1307
        %v1340 = vsub.f32 0.0, %v1308
        %v1341 = vmul.f32 %v1309, 1.442695
        %v1342 = vpow.pop %v1341
        %v1343 = vmul.f32 %v1310, 1.442695
        %v1344 = vpow.pop %v1343
        %v1345 = vmul.f32 %v1311, 1.442695
        %v1346 = vpow.pop %v1345
        %v1347 = vmul.f32 %v1312, 1.442695
        %v1348 = vpow.pop %v1347
        %v1349 = vmul.f32 %v1313, 1.442695
        %v1350 = vpow.pop %v1349
        %v1351 = vmul.f32 %v1314, 1.442695
        %v1352 = vpow.pop %v1351
        %v1353 = vmul.f32 %v1315, 1.442695
        %v1354 = vpow.pop %v1353
        %v1355 = vmul.f32 %v1316, 1.442695
        %v1356 = vpow.pop %v1355
        %v1357 = vmul.f32 %v1317, 1.442695
        %v1358 = vpow.pop %v1357
        %v1359 = vmul.f32 %v1318, 1.442695
        %v1360 = vpow.pop %v1359
        %v1361 = vmul.f32 %v1319, 1.442695
        %v1362 = vpow.pop %v1361
        %v1363 = vmul.f32 %v1320, 1.442695
        %v1364 = vpow.pop %v1363
        %v1365 = vmul.f32 %v1321, 1.442695
        %v1366 = vpow.pop %v1365
        %v1367 = vmul.f32 %v1322, 1.442695
        %v1368 = vpow.pop %v1367
        %v1369 = vmul.f32 %v1323, 1.442695
        %v1370 = vpow.pop %v1369
        %v1371 = vmul.f32 %v1324, 1.442695
        %v1372 = vpow.pop %v1371
        %v1373 = vmul.f32 %v1325, 1.442695
        %v1374 = vpow.pop %v1373
        %v1375 = vmul.f32 %v1326, 1.442695
        %v1376 = vpow.pop %v1375
        %v1377 = vmul.f32 %v1327, 1.442695
        %v1378 = vpow.pop %v1377
        %v1379 = vmul.f32 %v1328, 1.442695
        %v1380 = vpow.pop %v1379
        %v1381 = vmul.f32 %v1329, 1.442695
        %v1382 = vpow.pop %v1381
        %v1383 = vmul.f32 %v1330, 1.442695
        %v1384 = vpow.pop %v1383
        %v1385 = vmul.f32 %v1331, 1.442695
        %v1386 = vpow.pop %v1385
        %v1387 = vmul.f32 %v1332, 1.442695
        %v1388 = vpow.pop %v1387
        %v1389 = vmul.f32 %v1333, 1.442695
        %v1390 = vpow.pop %v1389
        %v1391 = vmul.f32 %v1334, 1.442695
        %v1392 = vpow.pop %v1391
        %v1393 = vmul.f32 %v1335, 1.442695
        %v1394 = vpow.pop %v1393
        %v1395 = vmul.f32 %v1336, 1.442695
        %v1396 = vpow.pop %v1395
        %v1397 = vmul.f32 %v1337, 1.442695
        %v1398 = vpow.pop %v1397
        %v1399 = vmul.f32 %v1338, 1.442695
        %v1400 = vpow.pop %v1399
        %v1401 = vmul.f32 %v1339, 1.442695
        %v1402 = vpow.pop %v1401
        %v1403 = vmul.f32 %v1340, 1.442695
        %v1404 = vpow.pop %v1403
        %v1405 = vadd.f32 %v1342, 1.0
        %v1406 = vadd.f32 %v1344, 1.0
        %v1407 = vadd.f32 %v1346, 1.0
        %v1408 = vadd.f32 %v1348, 1.0
        %v1409 = vadd.f32 %v1350, 1.0
        %v1410 = vadd.f32 %v1352, 1.0
        %v1411 = vadd.f32 %v1354, 1.0
        %v1412 = vadd.f32 %v1356, 1.0
        %v1413 = vadd.f32 %v1358, 1.0
        %v1414 = vadd.f32 %v1360, 1.0
        %v1415 = vadd.f32 %v1362, 1.0
        %v1416 = vadd.f32 %v1364, 1.0
        %v1417 = vadd.f32 %v1366, 1.0
        %v1418 = vadd.f32 %v1368, 1.0
        %v1419 = vadd.f32 %v1370, 1.0
        %v1420 = vadd.f32 %v1372, 1.0
        %v1421 = vadd.f32 %v1374, 1.0
        %v1422 = vadd.f32 %v1376, 1.0
        %v1423 = vadd.f32 %v1378, 1.0
        %v1424 = vadd.f32 %v1380, 1.0
        %v1425 = vadd.f32 %v1382, 1.0
        %v1426 = vadd.f32 %v1384, 1.0
        %v1427 = vadd.f32 %v1386, 1.0
        %v1428 = vadd.f32 %v1388, 1.0
        %v1429 = vadd.f32 %v1390, 1.0
        %v1430 = vadd.f32 %v1392, 1.0
        %v1431 = vadd.f32 %v1394, 1.0
        %v1432 = vadd.f32 %v1396, 1.0
        %v1433 = vadd.f32 %v1398, 1.0
        %v1434 = vadd.f32 %v1400, 1.0
        %v1435 = vadd.f32 %v1402, 1.0
        %v1436 = vadd.f32 %v1404, 1.0
        %v1437 = vrcp.pop %v1405
        %v1438 = vrcp.pop %v1406
        %v1439 = vrcp.pop %v1407
        %v1440 = vrcp.pop %v1408
        %v1441 = vrcp.pop %v1409
        %v1442 = vrcp.pop %v1410
        %v1443 = vrcp.pop %v1411
        %v1444 = vrcp.pop %v1412
        %v1445 = vrcp.pop %v1413
        %v1446 = vrcp.pop %v1414
        %v1447 = vrcp.pop %v1415
        %v1448 = vrcp.pop %v1416
        %v1449 = vrcp.pop %v1417
        %v1450 = vrcp.pop %v1418
        %v1451 = vrcp.pop %v1419
        %v1452 = vrcp.pop %v1420
        %v1453 = vrcp.pop %v1421
        %v1454 = vrcp.pop %v1422
        %v1455 = vrcp.pop %v1423
        %v1456 = vrcp.pop %v1424
        %v1457 = vrcp.pop %v1425
        %v1458 = vrcp.pop %v1426
        %v1459 = vrcp.pop %v1427
        %v1460 = vrcp.pop %v1428
        %v1461 = vrcp.pop %v1429
        %v1462 = vrcp.pop %v1430
        %v1463 = vrcp.pop %v1431
        %v1464 = vrcp.pop %v1432
        %v1465 = vrcp.pop %v1433
        %v1466 = vrcp.pop %v1434
        %v1467 = vrcp.pop %v1435
        %v1468 = vrcp.pop %v1436
        %v1469 = vmul.f32 %v1277, %v1437
        %v1470 = vmul.f32 %v1278, %v1438
        %v1471 = vmul.f32 %v1279, %v1439
        %v1472 = vmul.f32 %v1280, %v1440
        %v1473 = vmul.f32 %v1281, %v1441
        %v1474 = vmul.f32 %v1282, %v1442
        %v1475 = vmul.f32 %v1283, %v1443
        %v1476 = vmul.f32 %v1284, %v1444
        %v1477 = vmul.f32 %v1285, %v1445
        %v1478 = vmul.f32 %v1286, %v1446
        %v1479 = vmul.f32 %v1287, %v1447
        %v1480 = vmul.f32 %v1288, %v1448
        %v1481 = vmul.f32 %v1289, %v1449
        %v1482 = vmul.f32 %v1290, %v1450
        %v1483 = vmul.f32 %v1291, %v1451
        %v1484 = vmul.f32 %v1292, %v1452
        %v1485 = vmul.f32 %v1293, %v1453
        %v1486 = vmul.f32 %v1294, %v1454
        %v1487 = vmul.f32 %v1295, %v1455
        %v1488 = vmul.f32 %v1296, %v1456
        %v1489 = vmul.f32 %v1297, %v1457
        %v1490 = vmul.f32 %v1298, %v1458
        %v1491 = vmul.f32 %v1299, %v1459
        %v1492 = vmul.f32 %v1300, %v1460
        %v1493 = vmul.f32 %v1301, %v1461
        %v1494 = vmul.f32 %v1302, %v1462
        %v1495 = vmul.f32 %v1303, %v1463
        %v1496 = vmul.f32 %v1304, %v1464
        %v1497 = vmul.f32 %v1305, %v1465
        %v1498 = vmul.f32 %v1306, %v1466
        %v1499 = vmul.f32 %v1307, %v1467
        %v1500 = vmul.f32 %v1308, %v1468
        %v1501 = vpack.c.bf16 %v1470, %v1469
        %v1502 = vpack.c.bf16 %v1472, %v1471
        %v1503 = vpack.c.bf16 %v1474, %v1473
        %v1504 = vpack.c.bf16 %v1476, %v1475
        %v1505 = vpack.c.bf16 %v1478, %v1477
        %v1506 = vpack.c.bf16 %v1480, %v1479
        %v1507 = vpack.c.bf16 %v1482, %v1481
        %v1508 = vpack.c.bf16 %v1484, %v1483
        %v1509 = vpack.c.bf16 %v1486, %v1485
        %v1510 = vpack.c.bf16 %v1488, %v1487
        %v1511 = vpack.c.bf16 %v1490, %v1489
        %v1512 = vpack.c.bf16 %v1492, %v1491
        %v1513 = vpack.c.bf16 %v1494, %v1493
        %v1514 = vpack.c.bf16 %v1496, %v1495
        %v1515 = vpack.c.bf16 %v1498, %v1497
        %v1516 = vpack.c.bf16 %v1500, %v1499
        %v1533 = vunpack.c.l.b16 %v1501
        %v1534 = vunpack.c.h.b16 %v1501
        %v1535 = vunpack.c.l.b16 %v1502
        %v1536 = vunpack.c.h.b16 %v1502
        %v1537 = vunpack.c.l.b16 %v1503
        %v1538 = vunpack.c.h.b16 %v1503
        %v1539 = vunpack.c.l.b16 %v1504
        %v1540 = vunpack.c.h.b16 %v1504
        %v1541 = vunpack.c.l.b16 %v1505
        %v1542 = vunpack.c.h.b16 %v1505
        %v1543 = vunpack.c.l.b16 %v1506
        %v1544 = vunpack.c.h.b16 %v1506
        %v1545 = vunpack.c.l.b16 %v1507
        %v1546 = vunpack.c.h.b16 %v1507
        %v1547 = vunpack.c.l.b16 %v1508
        %v1548 = vunpack.c.h.b16 %v1508
        %v1549 = vunpack.c.l.b16 %v1509
        %v1550 = vunpack.c.h.b16 %v1509
        %v1551 = vunpack.c.l.b16 %v1510
        %v1552 = vunpack.c.h.b16 %v1510
        %v1553 = vunpack.c.l.b16 %v1511
        %v1554 = vunpack.c.h.b16 %v1511
        %v1555 = vunpack.c.l.b16 %v1512
        %v1556 = vunpack.c.h.b16 %v1512
        %v1557 = vunpack.c.l.b16 %v1513
        %v1558 = vunpack.c.h.b16 %v1513
        %v1559 = vunpack.c.l.b16 %v1514
        %v1560 = vunpack.c.h.b16 %v1514
        %v1561 = vunpack.c.l.b16 %v1515
        %v1562 = vunpack.c.h.b16 %v1515
        %v1563 = vunpack.c.l.b16 %v1516
        %v1564 = vunpack.c.h.b16 %v1516
        %v1565 = vpack.c.b16 %v1533, %v1533
        %v1566 = vpack.c.b16 %v1534, %v1534
        %v1567 = vpack.c.b16 %v1535, %v1535
        %v1568 = vpack.c.b16 %v1536, %v1536
        %v1569 = vpack.c.b16 %v1537, %v1537
        %v1570 = vpack.c.b16 %v1538, %v1538
        %v1571 = vpack.c.b16 %v1539, %v1539
        %v1572 = vpack.c.b16 %v1540, %v1540
        %v1573 = vpack.c.b16 %v1541, %v1541
        %v1574 = vpack.c.b16 %v1542, %v1542
        %v1575 = vpack.c.b16 %v1543, %v1543
        %v1576 = vpack.c.b16 %v1544, %v1544
        %v1577 = vpack.c.b16 %v1545, %v1545
        %v1578 = vpack.c.b16 %v1546, %v1546
        %v1579 = vpack.c.b16 %v1547, %v1547
        %v1580 = vpack.c.b16 %v1548, %v1548
        %v1581 = vpack.c.b16 %v1549, %v1549
        %v1582 = vpack.c.b16 %v1550, %v1550
        %v1583 = vpack.c.b16 %v1551, %v1551
        %v1584 = vpack.c.b16 %v1552, %v1552
        %v1585 = vpack.c.b16 %v1553, %v1553
        %v1586 = vpack.c.b16 %v1554, %v1554
        %v1587 = vpack.c.b16 %v1555, %v1555
        %v1588 = vpack.c.b16 %v1556, %v1556
        %v1589 = vpack.c.b16 %v1557, %v1557
        %v1590 = vpack.c.b16 %v1558, %v1558
        %v1591 = vpack.c.b16 %v1559, %v1559
        %v1592 = vpack.c.b16 %v1560, %v1560
        %v1593 = vpack.c.b16 %v1561, %v1561
        %v1594 = vpack.c.b16 %v1562, %v1562
        %v1595 = vpack.c.b16 %v1563, %v1563
        %v1596 = vpack.c.b16 %v1564, %v1564
        %1629 = vst [vmem:[%s220] sm:$0xf] %v1565
        %1630 = vst [vmem:[%s220 + $0x4] sm:$0xf] %v1566
        %1631 = vst [vmem:[%s220 + $0x8] sm:$0xf] %v1567
        %1632 = vst [vmem:[%s220 + $0xc] sm:$0xf] %v1568
        %1633 = vst [vmem:[%s220 + $0x10] sm:$0xf] %v1569
        %1634 = vst [vmem:[%s220 + $0x14] sm:$0xf] %v1570
        %1635 = vst [vmem:[%s220 + $0x18] sm:$0xf] %v1571
        %1636 = vst [vmem:[%s220 + $0x1c] sm:$0xf] %v1572
        %1637 = vst [vmem:[%s220 + $0x20] sm:$0xf] %v1573
        %1638 = vst [vmem:[%s220 + $0x24] sm:$0xf] %v1574
        %1639 = vst [vmem:[%s220 + $0x28] sm:$0xf] %v1575
        %1640 = vst [vmem:[%s220 + $0x2c] sm:$0xf] %v1576
        %1641 = vst [vmem:[%s220 + $0x30] sm:$0xf] %v1577
        %1642 = vst [vmem:[%s220 + $0x34] sm:$0xf] %v1578
        %1643 = vst [vmem:[%s220 + $0x38] sm:$0xf] %v1579
        %1644 = vst [vmem:[%s220 + $0x3c] sm:$0xf] %v1580
        %1645 = vst [vmem:[%s220 + $0x40] sm:$0xf] %v1581
        %1646 = vst [vmem:[%s220 + $0x44] sm:$0xf] %v1582
        %1647 = vst [vmem:[%s220 + $0x48] sm:$0xf] %v1583
        %1648 = vst [vmem:[%s220 + $0x4c] sm:$0xf] %v1584
        %1649 = vst [vmem:[%s220 + $0x50] sm:$0xf] %v1585
        %1650 = vst [vmem:[%s220 + $0x54] sm:$0xf] %v1586
        %1651 = vst [vmem:[%s220 + $0x58] sm:$0xf] %v1587
        %1652 = vst [vmem:[%s220 + $0x5c] sm:$0xf] %v1588
        %1653 = vst [vmem:[%s220 + $0x60] sm:$0xf] %v1589
        %1654 = vst [vmem:[%s220 + $0x64] sm:$0xf] %v1590
        %1655 = vst [vmem:[%s220 + $0x68] sm:$0xf] %v1591
        %1656 = vst [vmem:[%s220 + $0x6c] sm:$0xf] %v1592
        %1657 = vst [vmem:[%s220 + $0x70] sm:$0xf] %v1593
        %1658 = vst [vmem:[%s220 + $0x74] sm:$0xf] %v1594
        %1659 = vst [vmem:[%s220 + $0x78] sm:$0xf] %v1595
        %1660 = vst [vmem:[%s220 + $0x7c] sm:$0xf] %v1596
        %s1661 = sand.u32 %s128, 1
        %s1662 = scalar_lea.sflag [#allocation3], %s1661
        %s1663 = sand.u32 %s128, 1
        %s1664 = smul.addr %s1663, 128
        %s1665 = scalar_lea.vmem [#allocation2], %s1664
        // Predicated region
        $region33: #{tpu_custom_call.1} parent=31 // pred_check
          %p1666 = pneg %p138
        $region34: #{tpu_custom_call.1} parent=31 // pred_check_branch
          %1668 = sbr.rel (%p1666) target = $region36
        $region35: #{tpu_custom_call.1} parent=31 // pred_region
          %s1669 = smul.u32 16, %s24
          %s1671 = ssub.s32 2048, 2048
          %1672 = vsyncadd %s1662, %s1671
          %s1673 = smul.addr %s1669, 2
          %s1674 = sadd.s32 %s23, %s1673
          %s1675 = smul.addr %s22, 32
          %s1676 = sadd.s32 %s1674, %s1675
          %s1677 = smul.addr %s1676, 64
          %s1678 = scalar_lea.hbm %s3, %s1677
          %s1679 = sshll.u32 %s1665, 4
          %s1680 = int_to_ptr.vmem [resolvable:$true] %s1679
          %1685 = dma.vmem_to_hbm [thread:$0]  %s1680, 2048, %s1678, %s1662, 64, 64, 4
        $region36: #{tpu_custom_call.1} parent=31 // pred_fallthru
          _
      $region32: #{tpu_custom_call.1} parent=5 // pred_fallthru
        _
      %p1686 = scmp.le.s32.totalorder 2, %s12
      // Predicated region
      $region37: #{tpu_custom_call.1} parent=5 // pred_check
        %p1687 = pneg %p1686
      $region38: #{tpu_custom_call.1} parent=5 // pred_check_branch
        %1689 = sbr.rel (%p1687) target = $region40
      $region39: #{tpu_custom_call.1} parent=5 // pred_region
        %s1690 = ssub.s32 %s12, 2
        // Predicated region
        $region41: #{tpu_custom_call.1} parent=39 // pred_check
          %p1691 = pneg %p144
        $region42: #{tpu_custom_call.1} parent=39 // pred_check_branch
          %1693 = sbr.rel (%p1691) target = $region44
        $region43: #{tpu_custom_call.1} parent=39 // pred_region
          %s1694 = sand.u32 %s129, 1
          %s1695 = scalar_lea.sflag [#allocation3], %s1694
          %s1696 = sand.u32 %s129, 1
          %s1697 = smul.addr %s1696, 128
          %s1698 = scalar_lea.vmem [#allocation2], %s1697
          %1699 = dma.done %s1695, 2048
        $region44: #{tpu_custom_call.1} parent=39 // pred_fallthru
          _
      $region40: #{tpu_custom_call.1} parent=5 // pred_fallthru
        _
    $region6: #{tpu_custom_call.1} parent=1 // loop_footer
      %s16 = sadd.s32 1, %s12
    $region7: #{tpu_custom_call.1} parent=1 // loop_footer_branch
      %11 = sbr.rel target = $region3
    $region8: #{tpu_custom_call.1} parent=1 // loop_exit
      _
    %1700 = vsyncpa [#allocation3], 1
    %s1701 = scalar_lea.sflag [#allocation3], 1
    %1702 = vsyncpa %s1701, 1

</llo_original>
